<compile_context>
chip_gen: v7x
topology: tpu7x:2x2x1
jax: 0.10.0
libtpu: 0.0.40
codegen_flags: <defaults>
</compile_context>

<pallas_src>
import math

import jax
import jax.numpy as jnp
from jax.experimental import pallas as pl
from jax.experimental.pallas import tpu as pltpu

LN_EPS = 1e-5  # PyTorch nn.LayerNorm default
LANE = 128


def _round_up(n, m):
    return ((n + m - 1) // m) * m


def _layernorm(x, gamma, beta):
    mu = jnp.mean(x, axis=-1, keepdims=True)
    var = jnp.mean((x - mu) ** 2, axis=-1, keepdims=True)
    return (x - mu) * jax.lax.rsqrt(var + LN_EPS) * gamma + beta


def transformer_classifier_kernel(
        x_ref, pe_ref,
        wqkv_ref, bqkv_ref, wo_ref, bo_ref,
        g1_ref, be1_ref, w1_ref, bf1_ref, w2_ref, bf2_ref, g2_ref, be2_ref,
        wc1_ref, bc1_ref, wc2_ref, bc2_ref,
        out_ref):
    f32 = jnp.float32
    bf16 = jnp.bfloat16

    x = x_ref[...]                       # (Bt, S, D) f32 batch tile
    pe = pe_ref[0]                       # (S, D) f32
    Bt, S, D = x.shape
    Dp = wo_ref.shape[0]                 # lane-padded per-projection width

    # --- positional encoding (Dropout == identity in eval mode) ---
    xp = x + pe[None, :, :]
    x2 = xp.reshape(Bt * S, D)           # flatten batch*seq: real M for MXU

    # --- fused Q/K/V projection: (Bt*S, D) @ (D, 3*Dp), bf16 MXU operands.
    # Each projection occupies its own 128-lane-aligned slab so the slices
    # below are lane-tile aligned (no relayout); 1/sqrt(D) is pre-folded into
    # the Q block by the wrapper.
    qkv = (jnp.dot(x2.astype(bf16), wqkv_ref[...],
                   preferred_element_type=f32) + bqkv_ref[...])
    q = qkv[:, 0 * Dp:1 * Dp].reshape(Bt, S, Dp)
    k = qkv[:, 1 * Dp:2 * Dp].reshape(Bt, S, Dp)
    v = qkv[:, 2 * Dp:3 * Dp].reshape(Bt, S, Dp)

    # --- single-head self-attention (nheads=1), batched over the tile.
    # einsum lowers to dot_general with a batch dim; K is consumed transposed
    # by the MXU.  Padded lanes of q/k/v are zero, so they contribute nothing
    # to the contraction.
    scores = jnp.einsum('bqd,bkd->bqk', q.astype(bf16), k.astype(bf16),
                        preferred_element_type=f32)
    scores = scores - jnp.max(scores, axis=-1, keepdims=True)
    p = jnp.exp(scores)
    attn = p / jnp.sum(p, axis=-1, keepdims=True)          # exact divide, f32
    ctx = jnp.einsum('bqk,bkd->bqd', attn.astype(bf16), v.astype(bf16),
                     preferred_element_type=f32)            # (Bt, S, Dp)
    attn_out = (jnp.dot(ctx.reshape(Bt * S, Dp).astype(bf16), wo_ref[...],
                        preferred_element_type=f32) + bo_ref[...])

    # --- post-norm residual #1 (f32) ---
    h1 = _layernorm(x2 + attn_out, g1_ref[...], be1_ref[...])

    # --- feed-forward: Linear(D->Hp) -> ReLU -> Linear(Hp->D) ---
    ff = jnp.maximum(
        jnp.dot(h1.astype(bf16), w1_ref[...],
                preferred_element_type=f32) + bf1_ref[...], 0.0)
    ff = (jnp.dot(ff.astype(bf16), w2_ref[...],
                  preferred_element_type=f32) + bf2_ref[...])

    # --- post-norm residual #2 (f32) ---
    h2 = _layernorm(h1 + ff, g2_ref[...], be2_ref[...])

    # --- mean pooling over sequence (lengths=None path) ---
    # TODO(synk): masked-mean pooling for `lengths is not None`
    # (src_key_padding_mask branch of the module) is not implemented.
    pooled = jnp.mean(h2.reshape(Bt, S, D), axis=1)          # (Bt, D)

    # --- classifier head: Linear(D->Hp) -> ReLU -> Linear(Hp->Opad) ---
    c = jnp.maximum(
        jnp.dot(pooled.astype(bf16), wc1_ref[...],
                preferred_element_type=f32) + bc1_ref[...], 0.0)
    logits = (jnp.dot(c.astype(bf16), wc2_ref[...],
                      preferred_element_type=f32) + bc2_ref[...])

    out_ref[...] = logits


def make_positional_encoding(seq_len, d_model, max_len=5000):
    """Same construction as PositionalEncoding.__init__ (sin/cos interleave)."""
    position = jnp.arange(max_len, dtype=jnp.float32)[:, None]
    div_term = jnp.exp(jnp.arange(0, d_model, 2, dtype=jnp.float32)
                       * (-math.log(10000.0) / d_model))
    pe = jnp.zeros((max_len, d_model), jnp.float32)
    pe = pe.at[:, 0::2].set(jnp.sin(position * div_term))
    pe = pe.at[:, 1::2].set(jnp.cos(position * div_term))
    return pe[:seq_len][None]                                # (1, S, D)


def init_params(key, d_model, hidden, out_size):
    """Deterministic synthetic parameters in the nn.Module's natural shapes."""
    ks = jax.random.split(key, 8)

    def lin(k, fan_in, fan_out):
        w = jax.random.normal(k, (fan_in, fan_out), jnp.float32) / math.sqrt(fan_in)
        b = jnp.zeros((1, fan_out), jnp.float32)
        return w, b

    p = {}
    p['wq'], p['bq'] = lin(ks[0], d_model, d_model)
    p['wk'], p['bk'] = lin(ks[1], d_model, d_model)
    p['wv'], p['bv'] = lin(ks[2], d_model, d_model)
    p['wo'], p['bo'] = lin(ks[3], d_model, d_model)
    p['w1'], p['bf1'] = lin(ks[4], d_model, hidden)          # ff linear1
    p['w2'], p['bf2'] = lin(ks[5], hidden, d_model)          # ff linear2
    p['wc1'], p['bc1'] = lin(ks[6], d_model, hidden)         # clf linear1
    p['wc2'], p['bc2'] = lin(ks[7], hidden, out_size)        # clf linear2
    p['g1'] = jnp.ones((1, d_model), jnp.float32)
    p['be1'] = jnp.zeros((1, d_model), jnp.float32)
    p['g2'] = jnp.ones((1, d_model), jnp.float32)
    p['be2'] = jnp.zeros((1, d_model), jnp.float32)
    return p


def prepare_kernel_params(p, d_model, hidden, out_size):
    """Fuse / pad / pre-scale / downcast params for the kernel.

    * Q/K/V fused into (D, 3*Dp); each projection sits in its own 128-lane
      slab; 1/sqrt(D) folded into the Q block (weights + bias).
    * Hidden dim and classifier out dim zero-padded to 128-lane multiples.
    * MXU weight operands cast to bf16 once; biases / LN params stay f32.
    """
    D, H, O = d_model, hidden, out_size
    Dp = _round_up(max(D, LANE), LANE)
    Hp = _round_up(max(H, LANE), LANE)
    Opad = _round_up(max(O, LANE), LANE)
    scale = 1.0 / math.sqrt(D)

    def pad_cols(a, width):
        return jnp.pad(a, ((0, 0), (0, width - a.shape[1])))

    def pad_rows(a, height):
        return jnp.pad(a, ((0, height - a.shape[0]), (0, 0)))

    wqkv = jnp.concatenate([pad_cols(p['wq'] * scale, Dp),
                            pad_cols(p['wk'], Dp),
                            pad_cols(p['wv'], Dp)], axis=1)       # (D, 3*Dp)
    bqkv = jnp.concatenate([pad_cols(p['bq'] * scale, Dp),
                            pad_cols(p['bk'], Dp),
                            pad_cols(p['bv'], Dp)], axis=1)       # (1, 3*Dp)
    wo = pad_rows(p['wo'], Dp)                                    # (Dp, D)
    w1, bf1 = pad_cols(p['w1'], Hp), pad_cols(p['bf1'], Hp)       # (D, Hp)
    w2 = pad_rows(p['w2'], Hp)                                    # (Hp, D)
    wc1, bc1 = pad_cols(p['wc1'], Hp), pad_cols(p['bc1'], Hp)     # (D, Hp)
    wc2 = pad_cols(pad_rows(p['wc2'], Hp), Opad)                  # (Hp, Opad)
    bc2 = pad_cols(p['bc2'], Opad)                                # (1, Opad)

    bf16 = jnp.bfloat16
    weights = [wqkv.astype(bf16), bqkv, wo.astype(bf16), p['bo'],
               p['g1'], p['be1'],
               w1.astype(bf16), bf1, w2.astype(bf16), p['bf2'],
               p['g2'], p['be2'],
               wc1.astype(bf16), bc1, wc2.astype(bf16), bc2]
    return weights, Dp, Hp, Opad


def _resident_spec(shape, single_buffer):
    """Full-array block with a constant index map (resident across steps)."""
    idx = lambda b, n=len(shape): (0,) * n
    if single_buffer and hasattr(pl, "Buffered"):
        # Constant index map -> never re-fetched; double-buffering is pure
        # VMEM waste, so request a single buffer.
        return pl.BlockSpec(shape, idx, pipeline_mode=pl.Buffered(1))
    return pl.BlockSpec(shape, idx)


def balanced_transformer_forward(x, pe, params, out_size, batch_tile=None):
    """x: (B, S, D) float32 -> (num_targets=1, B, out_size) float32."""
    B, S, D = x.shape
    hidden = params['w1'].shape[1]
    weights, Dp, Hp, Opad = prepare_kernel_params(params, D, hidden, out_size)

    # --- batch tiling: ~512 flattened rows per grid step (per-step overhead
    # ~0.35 us; 512-row tiles sit near the HBM roofline), sublane-aligned. ---
    if batch_tile is None:
        bt = max(8, ((512 // max(S, 1)) // 8) * 8)
        # v7x has 2 TensorCores: a 1-step grid cannot shard the "parallel"
        # axis, so keep >= 2 steps whenever the batch is large enough.
        if B >= 16:
            bt = min(bt, _round_up(pl.cdiv(B, 2), 8))
    else:
        bt = batch_tile
    if bt >= B:
        bt = B                                  # tiny batch: one grid step
    else:
        bt = max(8, (bt // 8) * 8)
    Bp = pl.cdiv(B, bt) * bt
    if Bp != B:
        x = jnp.pad(x, ((0, Bp - B), (0, 0), (0, 0)))
    grid = (Bp // bt,)

    # --- derived (tight) VMEM limit: weights once + pipelined act tiles +
    # a generous bound on live intermediates, 4x headroom, capped at 48 MiB
    # so v7x (64 MiB/TC) keeps room for compiler-internal scratch. ---
    weight_bytes = sum(int(w.size) * w.dtype.itemsize for w in weights)
    act_bytes = 2 * (bt * S * D + S * D) * 4 + 2 * bt * Opad * 4
    inter_bytes = (bt * S * (3 * Dp + 2 * Hp + 6 * D) + 3 * bt * S * S) * 4
    vmem_limit = int(min(max(4 * (weight_bytes + act_bytes + inter_bytes),
                             16 * 1024 * 1024), 48 * 1024 * 1024))

    # --- advisory cost estimate (weights counted once: constant index maps) --
    flops = int(2 * Bp * S * D * 3 * Dp            # fused QKV projection
                + 2 * 2 * Bp * S * S * Dp          # scores + context
                + 2 * Bp * S * Dp * D              # output projection
                + 2 * 2 * Bp * S * D * Hp          # feed-forward
                + 2 * Bp * D * Hp + 2 * Bp * Hp * Opad)  # classifier head
    transcendentals = int(Bp * S * S + 2 * Bp * S)
    bytes_accessed = int(4 * (x.size + pe.size + Bp * Opad) + weight_bytes)

    def run(single_buffer_weights):
        in_specs = ([pl.BlockSpec((bt, S, D), lambda b: (b, 0, 0))]
                    + [_resident_spec(a.shape, single_buffer_weights)
                       for a in (pe, *weights)])
        return pl.pallas_call(
            transformer_classifier_kernel,
            out_shape=jax.ShapeDtypeStruct((Bp, Opad), jnp.float32),
            grid=grid,
            in_specs=in_specs,
            out_specs=pl.BlockSpec((bt, Opad), lambda b: (b, 0)),
            compiler_params=pltpu.CompilerParams(
                dimension_semantics=("parallel",),   # independent batch tiles
                vmem_limit_bytes=vmem_limit),
            cost_estimate=pl.CostEstimate(flops=flops,
                                          transcendentals=transcendentals,
                                          bytes_accessed=bytes_accessed),
        )(x, pe, *weights)

    try:
        out = run(single_buffer_weights=True)
    except Exception:
        # Fallback if this JAX build rejects pipeline_mode=pl.Buffered(1).
        out = run(single_buffer_weights=False)

    # Strip batch / lane padding; num_targets = 1 -> torch.stack adds axis 0.
    return out[:B, :out_size][None]


def reference_forward(x, pe, p, out_size, cast_dtype=jnp.float32):
    """Pure-JAX reference mirroring the PyTorch forward (eval mode).
    cast_dtype=jnp.bfloat16 mirrors the kernel's MXU-operand precision."""
    D = x.shape[-1]
    scale = 1.0 / math.sqrt(D)

    def mm(a, w):
        return jnp.dot(a.astype(cast_dtype), w.astype(cast_dtype),
                       preferred_element_type=jnp.float32)

    xp = x + pe
    q = mm(xp, p['wq'] * scale) + p['bq'] * scale
    k = mm(xp, p['wk']) + p['bk']
    v = mm(xp, p['wv']) + p['bv']
    scores = jnp.einsum('bqd,bkd->bqk', q.astype(cast_dtype),
                        k.astype(cast_dtype),
                        preferred_element_type=jnp.float32)
    attn = jax.nn.softmax(scores, axis=-1)
    ctx = jnp.einsum('bqk,bkd->bqd', attn.astype(cast_dtype),
                     v.astype(cast_dtype),
                     preferred_element_type=jnp.float32)
    attn_out = mm(ctx, p['wo']) + p['bo']
    h1 = _layernorm(xp + attn_out, p['g1'], p['be1'])
    ff = jnp.maximum(mm(h1, p['w1']) + p['bf1'], 0.0)
    ff = mm(ff, p['w2']) + p['bf2']
    h2 = _layernorm(h1 + ff, p['g2'], p['be2'])
    pooled = jnp.mean(h2, axis=1)
    c = jnp.maximum(mm(pooled, p['wc1']) + p['bc1'], 0.0)
    return (mm(c, p['wc2']) + p['bc2'])[None]


if __name__ == "__main__":
    # Small shapes: batch=2, seq=8, input_size(d_model)=32, hidden=64, output=4
    B, S, D, H, O = 2, 8, 32, 64, 4

    key = jax.random.PRNGKey(0)
    kx, kp = jax.random.split(key)
    x = jax.random.normal(kx, (B, S, D), jnp.float32)

    params = init_params(kp, D, H, O)
    pe = make_positional_encoding(S, D)

    out = balanced_transformer_forward(x, pe, params, O)
    out = jax.block_until_ready(out)
    assert out.shape == (1, B, O), out.shape
    assert bool(jnp.all(jnp.isfinite(out)))

    # Tight check vs a reference using the same bf16 MXU-operand precision.
    ref_bf16 = reference_forward(x, pe, params, O, cast_dtype=jnp.bfloat16)
    assert jnp.allclose(out, ref_bf16, atol=1e-2, rtol=1e-2), (
        float(jnp.max(jnp.abs(out - ref_bf16))))

    # Loose sanity check vs the full-f32 reference (bf16 MXU inputs shift
    # numerics slightly; this guards against gross wiring errors only).
    ref_f32 = reference_forward(x, pe, params, O, cast_dtype=jnp.float32)
    assert jnp.allclose(out, ref_f32, atol=1e-1, rtol=1e-1), (
        float(jnp.max(jnp.abs(out - ref_f32))))

    print("KERNEL_OK")
</pallas_src>

<mosaic_0001>
module attributes {stable_mosaic.version = 11 : i64} {
  func.func @transformer_classifier_kernel(%arg0: i32, %arg1: memref<2x8x32xf32, #tpu.memory_space<vmem>>, %arg2: memref<1x8x32xf32, #tpu.memory_space<vmem>>, %arg3: memref<32x384xbf16, #tpu.memory_space<vmem>>, %arg4: memref<1x384xf32, #tpu.memory_space<vmem>>, %arg5: memref<128x32xbf16, #tpu.memory_space<vmem>>, %arg6: memref<1x32xf32, #tpu.memory_space<vmem>>, %arg7: memref<1x32xf32, #tpu.memory_space<vmem>>, %arg8: memref<1x32xf32, #tpu.memory_space<vmem>>, %arg9: memref<32x128xbf16, #tpu.memory_space<vmem>>, %arg10: memref<1x128xf32, #tpu.memory_space<vmem>>, %arg11: memref<128x32xbf16, #tpu.memory_space<vmem>>, %arg12: memref<1x32xf32, #tpu.memory_space<vmem>>, %arg13: memref<1x32xf32, #tpu.memory_space<vmem>>, %arg14: memref<1x32xf32, #tpu.memory_space<vmem>>, %arg15: memref<32x128xbf16, #tpu.memory_space<vmem>>, %arg16: memref<1x128xf32, #tpu.memory_space<vmem>>, %arg17: memref<128x128xbf16, #tpu.memory_space<vmem>>, %arg18: memref<1x128xf32, #tpu.memory_space<vmem>>, %arg19: memref<2x128xf32, #tpu.memory_space<vmem>>) attributes {dimension_semantics = [#tpu.dimension_semantics<parallel>], iteration_bounds = array<i64: 1>, scalar_prefetch = 0 : i64, scratch_operands = 0 : i64, tpu.core_type = #tpu.core_type<tc>, window_params = [{transform_indices = @transform_0, window_bounds = array<i64: 2, 8, 32>}, {pipeline_mode = #tpu.pipeline_mode<synchronous>, transform_indices = @transform_1, window_bounds = array<i64: 1, 8, 32>}, {pipeline_mode = #tpu.pipeline_mode<synchronous>, transform_indices = @transform_2, window_bounds = array<i64: 32, 384>}, {pipeline_mode = #tpu.pipeline_mode<synchronous>, transform_indices = @transform_3, window_bounds = array<i64: 1, 384>}, {pipeline_mode = #tpu.pipeline_mode<synchronous>, transform_indices = @transform_4, window_bounds = array<i64: 128, 32>}, {pipeline_mode = #tpu.pipeline_mode<synchronous>, transform_indices = @transform_5, window_bounds = array<i64: 1, 32>}, {pipeline_mode = #tpu.pipeline_mode<synchronous>, transform_indices = @transform_6, window_bounds = array<i64: 1, 32>}, {pipeline_mode = #tpu.pipeline_mode<synchronous>, transform_indices = @transform_7, window_bounds = array<i64: 1, 32>}, {pipeline_mode = #tpu.pipeline_mode<synchronous>, transform_indices = @transform_8, window_bounds = array<i64: 32, 128>}, {pipeline_mode = #tpu.pipeline_mode<synchronous>, transform_indices = @transform_9, window_bounds = array<i64: 1, 128>}, {pipeline_mode = #tpu.pipeline_mode<synchronous>, transform_indices = @transform_10, window_bounds = array<i64: 128, 32>}, {pipeline_mode = #tpu.pipeline_mode<synchronous>, transform_indices = @transform_11, window_bounds = array<i64: 1, 32>}, {pipeline_mode = #tpu.pipeline_mode<synchronous>, transform_indices = @transform_12, window_bounds = array<i64: 1, 32>}, {pipeline_mode = #tpu.pipeline_mode<synchronous>, transform_indices = @transform_13, window_bounds = array<i64: 1, 32>}, {pipeline_mode = #tpu.pipeline_mode<synchronous>, transform_indices = @transform_14, window_bounds = array<i64: 32, 128>}, {pipeline_mode = #tpu.pipeline_mode<synchronous>, transform_indices = @transform_15, window_bounds = array<i64: 1, 128>}, {pipeline_mode = #tpu.pipeline_mode<synchronous>, transform_indices = @transform_16, window_bounds = array<i64: 128, 128>}, {pipeline_mode = #tpu.pipeline_mode<synchronous>, transform_indices = @transform_17, window_bounds = array<i64: 1, 128>}, {transform_indices = @transform_18, window_bounds = array<i64: 2, 128>}]} {
    %c0 = arith.constant 0 : index
    %c0_0 = arith.constant 0 : index
    %c0_1 = arith.constant 0 : index
    %0 = vector.load %arg1[%c0, %c0_0, %c0_1] : memref<2x8x32xf32, #tpu.memory_space<vmem>>, vector<2x8x32xf32>
    %c0_2 = arith.constant 0 : index
    %c0_3 = arith.constant 0 : index
    %c0_4 = arith.constant 0 : index
    %1 = vector.load %arg2[%c0_2, %c0_3, %c0_4] : memref<1x8x32xf32, #tpu.memory_space<vmem>>, vector<1x8x32xf32>
    %2 = vector.shape_cast %1 : vector<1x8x32xf32> to vector<8x32xf32>
    %3 = vector.shape_cast %2 : vector<8x32xf32> to vector<1x8x32xf32>
    %4 = vector.broadcast %3 : vector<1x8x32xf32> to vector<2x8x32xf32>
    %5 = arith.addf %0, %4 : vector<2x8x32xf32>
    %6 = vector.shape_cast %5 : vector<2x8x32xf32> to vector<16x32xf32>
    %7 = arith.truncf %6 : vector<16x32xf32> to vector<16x32xbf16>
    %c0_5 = arith.constant 0 : index
    %c0_6 = arith.constant 0 : index
    %8 = vector.load %arg3[%c0_5, %c0_6] : memref<32x384xbf16, #tpu.memory_space<vmem>>, vector<32x384xbf16>
    %cst = arith.constant dense<0.000000e+00> : vector<16x384xf32>
    %9 = tpu.matmul %7, %8, %cst {dimension_numbers = #tpu.dot_dimension_numbers<[1], [0], [0], [1], [0, 0, 1, 1], [], []>} : vector<16x32xbf16>, vector<32x384xbf16>, vector<16x384xf32> -> vector<16x384xf32>
    %c0_7 = arith.constant 0 : index
    %c0_8 = arith.constant 0 : index
    %10 = vector.load %arg4[%c0_7, %c0_8] : memref<1x384xf32, #tpu.memory_space<vmem>>, vector<1x384xf32>
    %11 = vector.broadcast %10 : vector<1x384xf32> to vector<16x384xf32>
    %12 = arith.addf %9, %11 : vector<16x384xf32>
    %13 = vector.extract_strided_slice %12 {offsets = [0, 0], sizes = [16, 128], strides = [1, 1]} : vector<16x384xf32> to vector<16x128xf32>
    %14 = vector.shape_cast %13 : vector<16x128xf32> to vector<2x8x128xf32>
    %15 = vector.extract_strided_slice %12 {offsets = [0, 128], sizes = [16, 128], strides = [1, 1]} : vector<16x384xf32> to vector<16x128xf32>
    %16 = vector.shape_cast %15 : vector<16x128xf32> to vector<2x8x128xf32>
    %17 = vector.extract_strided_slice %12 {offsets = [0, 256], sizes = [16, 128], strides = [1, 1]} : vector<16x384xf32> to vector<16x128xf32>
    %18 = vector.shape_cast %17 : vector<16x128xf32> to vector<2x8x128xf32>
    %19 = arith.truncf %14 : vector<2x8x128xf32> to vector<2x8x128xbf16>
    %20 = arith.truncf %16 : vector<2x8x128xf32> to vector<2x8x128xbf16>
    "tpu.trace_start"() <{level = 10 : i32, message = "bqd,bkd->bqk"}> : () -> ()
    %cst_9 = arith.constant dense<0.000000e+00> : vector<2x8x8xf32>
    %21 = tpu.matmul %19, %20, %cst_9 {dimension_numbers = #tpu.dot_dimension_numbers<[2], [2], [1], [1], [0, 0, 0, 1, 1, 1], [0], [0]>} : vector<2x8x128xbf16>, vector<2x8x128xbf16>, vector<2x8x8xf32> -> vector<2x8x8xf32>
    "tpu.trace_stop"() : () -> ()
    %cst_10 = arith.constant dense<0xFF800000> : vector<2x8xf32>
    %22 = vector.multi_reduction <maximumf>, %21, %cst_10 [2] : vector<2x8x8xf32> to vector<2x8xf32>
    %23 = vector.shape_cast %22 : vector<2x8xf32> to vector<2x8x1xf32>
    %24 = vector.broadcast %23 : vector<2x8x1xf32> to vector<2x8x8xf32>
    %25 = arith.subf %21, %24 : vector<2x8x8xf32>
    %26 = math.exp %25 : vector<2x8x8xf32>
    %cst_11 = arith.constant dense<0.000000e+00> : vector<2x8xf32>
    %27 = vector.multi_reduction <add>, %26, %cst_11 [2] : vector<2x8x8xf32> to vector<2x8xf32>
    %28 = vector.shape_cast %27 : vector<2x8xf32> to vector<2x8x1xf32>
    %29 = vector.broadcast %28 : vector<2x8x1xf32> to vector<2x8x8xf32>
    %30 = arith.divf %26, %29 : vector<2x8x8xf32>
    %31 = arith.truncf %30 : vector<2x8x8xf32> to vector<2x8x8xbf16>
    %32 = arith.truncf %18 : vector<2x8x128xf32> to vector<2x8x128xbf16>
    "tpu.trace_start"() <{level = 10 : i32, message = "bqk,bkd->bqd"}> : () -> ()
    %cst_12 = arith.constant dense<0.000000e+00> : vector<2x8x128xf32>
    %33 = tpu.matmul %31, %32, %cst_12 {dimension_numbers = #tpu.dot_dimension_numbers<[2], [1], [1], [2], [0, 0, 0, 1, 1, 2], [0], [0]>} : vector<2x8x8xbf16>, vector<2x8x128xbf16>, vector<2x8x128xf32> -> vector<2x8x128xf32>
    "tpu.trace_stop"() : () -> ()
    %34 = vector.shape_cast %33 : vector<2x8x128xf32> to vector<16x128xf32>
    %35 = arith.truncf %34 : vector<16x128xf32> to vector<16x128xbf16>
    %c0_13 = arith.constant 0 : index
    %c0_14 = arith.constant 0 : index
    %36 = vector.load %arg5[%c0_13, %c0_14] : memref<128x32xbf16, #tpu.memory_space<vmem>>, vector<128x32xbf16>
    %cst_15 = arith.constant dense<0.000000e+00> : vector<16x32xf32>
    %37 = tpu.matmul %35, %36, %cst_15 {dimension_numbers = #tpu.dot_dimension_numbers<[1], [0], [0], [1], [0, 0, 1, 1], [], []>} : vector<16x128xbf16>, vector<128x32xbf16>, vector<16x32xf32> -> vector<16x32xf32>
    %c0_16 = arith.constant 0 : index
    %c0_17 = arith.constant 0 : index
    %38 = vector.load %arg6[%c0_16, %c0_17] : memref<1x32xf32, #tpu.memory_space<vmem>>, vector<1x32xf32>
    %39 = vector.broadcast %38 : vector<1x32xf32> to vector<16x32xf32>
    %40 = arith.addf %37, %39 : vector<16x32xf32>
    %41 = arith.addf %6, %40 : vector<16x32xf32>
    %c0_18 = arith.constant 0 : index
    %c0_19 = arith.constant 0 : index
    %42 = vector.load %arg7[%c0_18, %c0_19] : memref<1x32xf32, #tpu.memory_space<vmem>>, vector<1x32xf32>
    %c0_20 = arith.constant 0 : index
    %c0_21 = arith.constant 0 : index
    %43 = vector.load %arg8[%c0_20, %c0_21] : memref<1x32xf32, #tpu.memory_space<vmem>>, vector<1x32xf32>
    %cst_22 = arith.constant dense<0.000000e+00> : vector<16xf32>
    %44 = vector.multi_reduction <add>, %41, %cst_22 [1] : vector<16x32xf32> to vector<16xf32>
    %45 = vector.shape_cast %44 : vector<16xf32> to vector<16x1xf32>
    %cst_23 = arith.constant 3.200000e+01 : f32
    %46 = vector.broadcast %cst_23 : f32 to vector<16x1xf32>
    %47 = arith.divf %45, %46 : vector<16x1xf32>
    %48 = vector.broadcast %47 : vector<16x1xf32> to vector<16x32xf32>
    %49 = arith.subf %41, %48 : vector<16x32xf32>
    %50 = arith.mulf %49, %49 : vector<16x32xf32>
    %cst_24 = arith.constant dense<0.000000e+00> : vector<16xf32>
    %51 = vector.multi_reduction <add>, %50, %cst_24 [1] : vector<16x32xf32> to vector<16xf32>
    %52 = vector.shape_cast %51 : vector<16xf32> to vector<16x1xf32>
    %cst_25 = arith.constant 3.200000e+01 : f32
    %53 = vector.broadcast %cst_25 : f32 to vector<16x1xf32>
    %54 = arith.divf %52, %53 : vector<16x1xf32>
    %55 = vector.broadcast %47 : vector<16x1xf32> to vector<16x32xf32>
    %56 = arith.subf %41, %55 : vector<16x32xf32>
    %cst_26 = arith.constant 9.99999974E-6 : f32
    %57 = vector.broadcast %cst_26 : f32 to vector<16x1xf32>
    %58 = arith.addf %54, %57 : vector<16x1xf32>
    %59 = math.rsqrt %58 : vector<16x1xf32>
    %60 = vector.broadcast %59 : vector<16x1xf32> to vector<16x32xf32>
    %61 = arith.mulf %56, %60 : vector<16x32xf32>
    %62 = vector.broadcast %42 : vector<1x32xf32> to vector<16x32xf32>
    %63 = arith.mulf %61, %62 : vector<16x32xf32>
    %64 = vector.broadcast %43 : vector<1x32xf32> to vector<16x32xf32>
    %65 = arith.addf %63, %64 : vector<16x32xf32>
    %66 = arith.truncf %65 : vector<16x32xf32> to vector<16x32xbf16>
    %c0_27 = arith.constant 0 : index
    %c0_28 = arith.constant 0 : index
    %67 = vector.load %arg9[%c0_27, %c0_28] : memref<32x128xbf16, #tpu.memory_space<vmem>>, vector<32x128xbf16>
    %cst_29 = arith.constant dense<0.000000e+00> : vector<16x128xf32>
    %68 = tpu.matmul %66, %67, %cst_29 {dimension_numbers = #tpu.dot_dimension_numbers<[1], [0], [0], [1], [0, 0, 1, 1], [], []>} : vector<16x32xbf16>, vector<32x128xbf16>, vector<16x128xf32> -> vector<16x128xf32>
    %c0_30 = arith.constant 0 : index
    %c0_31 = arith.constant 0 : index
    %69 = vector.load %arg10[%c0_30, %c0_31] : memref<1x128xf32, #tpu.memory_space<vmem>>, vector<1x128xf32>
    %70 = vector.broadcast %69 : vector<1x128xf32> to vector<16x128xf32>
    %71 = arith.addf %68, %70 : vector<16x128xf32>
    %cst_32 = arith.constant 0.000000e+00 : f32
    %72 = vector.broadcast %cst_32 : f32 to vector<16x128xf32>
    %73 = arith.maximumf %71, %72 : vector<16x128xf32>
    %74 = arith.truncf %73 : vector<16x128xf32> to vector<16x128xbf16>
    %c0_33 = arith.constant 0 : index
    %c0_34 = arith.constant 0 : index
    %75 = vector.load %arg11[%c0_33, %c0_34] : memref<128x32xbf16, #tpu.memory_space<vmem>>, vector<128x32xbf16>
    %cst_35 = arith.constant dense<0.000000e+00> : vector<16x32xf32>
    %76 = tpu.matmul %74, %75, %cst_35 {dimension_numbers = #tpu.dot_dimension_numbers<[1], [0], [0], [1], [0, 0, 1, 1], [], []>} : vector<16x128xbf16>, vector<128x32xbf16>, vector<16x32xf32> -> vector<16x32xf32>
    %c0_36 = arith.constant 0 : index
    %c0_37 = arith.constant 0 : index
    %77 = vector.load %arg12[%c0_36, %c0_37] : memref<1x32xf32, #tpu.memory_space<vmem>>, vector<1x32xf32>
    %78 = vector.broadcast %77 : vector<1x32xf32> to vector<16x32xf32>
    %79 = arith.addf %76, %78 : vector<16x32xf32>
    %80 = arith.addf %65, %79 : vector<16x32xf32>
    %c0_38 = arith.constant 0 : index
    %c0_39 = arith.constant 0 : index
    %81 = vector.load %arg13[%c0_38, %c0_39] : memref<1x32xf32, #tpu.memory_space<vmem>>, vector<1x32xf32>
    %c0_40 = arith.constant 0 : index
    %c0_41 = arith.constant 0 : index
    %82 = vector.load %arg14[%c0_40, %c0_41] : memref<1x32xf32, #tpu.memory_space<vmem>>, vector<1x32xf32>
    %cst_42 = arith.constant dense<0.000000e+00> : vector<16xf32>
    %83 = vector.multi_reduction <add>, %80, %cst_42 [1] : vector<16x32xf32> to vector<16xf32>
    %84 = vector.shape_cast %83 : vector<16xf32> to vector<16x1xf32>
    %cst_43 = arith.constant 3.200000e+01 : f32
    %85 = vector.broadcast %cst_43 : f32 to vector<16x1xf32>
    %86 = arith.divf %84, %85 : vector<16x1xf32>
    %87 = vector.broadcast %86 : vector<16x1xf32> to vector<16x32xf32>
    %88 = arith.subf %80, %87 : vector<16x32xf32>
    %89 = arith.mulf %88, %88 : vector<16x32xf32>
    %cst_44 = arith.constant dense<0.000000e+00> : vector<16xf32>
    %90 = vector.multi_reduction <add>, %89, %cst_44 [1] : vector<16x32xf32> to vector<16xf32>
    %91 = vector.shape_cast %90 : vector<16xf32> to vector<16x1xf32>
    %cst_45 = arith.constant 3.200000e+01 : f32
    %92 = vector.broadcast %cst_45 : f32 to vector<16x1xf32>
    %93 = arith.divf %91, %92 : vector<16x1xf32>
    %94 = vector.broadcast %86 : vector<16x1xf32> to vector<16x32xf32>
    %95 = arith.subf %80, %94 : vector<16x32xf32>
    %cst_46 = arith.constant 9.99999974E-6 : f32
    %96 = vector.broadcast %cst_46 : f32 to vector<16x1xf32>
    %97 = arith.addf %93, %96 : vector<16x1xf32>
    %98 = math.rsqrt %97 : vector<16x1xf32>
    %99 = vector.broadcast %98 : vector<16x1xf32> to vector<16x32xf32>
    %100 = arith.mulf %95, %99 : vector<16x32xf32>
    %101 = vector.broadcast %81 : vector<1x32xf32> to vector<16x32xf32>
    %102 = arith.mulf %100, %101 : vector<16x32xf32>
    %103 = vector.broadcast %82 : vector<1x32xf32> to vector<16x32xf32>
    %104 = arith.addf %102, %103 : vector<16x32xf32>
    %105 = vector.shape_cast %104 : vector<16x32xf32> to vector<2x8x32xf32>
    %cst_47 = arith.constant dense<0.000000e+00> : vector<2x32xf32>
    %106 = vector.multi_reduction <add>, %105, %cst_47 [1] : vector<2x8x32xf32> to vector<2x32xf32>
    %cst_48 = arith.constant 8.000000e+00 : f32
    %107 = vector.broadcast %cst_48 : f32 to vector<2x32xf32>
    %108 = arith.divf %106, %107 : vector<2x32xf32>
    %109 = arith.truncf %108 : vector<2x32xf32> to vector<2x32xbf16>
    %c0_49 = arith.constant 0 : index
    %c0_50 = arith.constant 0 : index
    %110 = vector.load %arg15[%c0_49, %c0_50] : memref<32x128xbf16, #tpu.memory_space<vmem>>, vector<32x128xbf16>
    %cst_51 = arith.constant dense<0.000000e+00> : vector<2x128xf32>
    %111 = tpu.matmul %109, %110, %cst_51 {dimension_numbers = #tpu.dot_dimension_numbers<[1], [0], [0], [1], [0, 0, 1, 1], [], []>} : vector<2x32xbf16>, vector<32x128xbf16>, vector<2x128xf32> -> vector<2x128xf32>
    %c0_52 = arith.constant 0 : index
    %c0_53 = arith.constant 0 : index
    %112 = vector.load %arg16[%c0_52, %c0_53] : memref<1x128xf32, #tpu.memory_space<vmem>>, vector<1x128xf32>
    %113 = vector.broadcast %112 : vector<1x128xf32> to vector<2x128xf32>
    %114 = arith.addf %111, %113 : vector<2x128xf32>
    %cst_54 = arith.constant 0.000000e+00 : f32
    %115 = vector.broadcast %cst_54 : f32 to vector<2x128xf32>
    %116 = arith.maximumf %114, %115 : vector<2x128xf32>
    %117 = arith.truncf %116 : vector<2x128xf32> to vector<2x128xbf16>
    %c0_55 = arith.constant 0 : index
    %c0_56 = arith.constant 0 : index
    %118 = vector.load %arg17[%c0_55, %c0_56] : memref<128x128xbf16, #tpu.memory_space<vmem>>, vector<128x128xbf16>
    %cst_57 = arith.constant dense<0.000000e+00> : vector<2x128xf32>
    %119 = tpu.matmul %117, %118, %cst_57 {dimension_numbers = #tpu.dot_dimension_numbers<[1], [0], [0], [1], [0, 0, 1, 1], [], []>} : vector<2x128xbf16>, vector<128x128xbf16>, vector<2x128xf32> -> vector<2x128xf32>
    %c0_58 = arith.constant 0 : index
    %c0_59 = arith.constant 0 : index
    %120 = vector.load %arg18[%c0_58, %c0_59] : memref<1x128xf32, #tpu.memory_space<vmem>>, vector<1x128xf32>
    %121 = vector.broadcast %120 : vector<1x128xf32> to vector<2x128xf32>
    %122 = arith.addf %119, %121 : vector<2x128xf32>
    %c0_60 = arith.constant 0 : index
    %c0_61 = arith.constant 0 : index
    %123 = vector.load %arg19[%c0_60, %c0_61] : memref<2x128xf32, #tpu.memory_space<vmem>>, vector<2x128xf32>
    tpu.vector_store %arg19[%c0_60, %c0_61], %122 {strides = array<i32>} : memref<2x128xf32, #tpu.memory_space<vmem>>, vector<2x128xf32>,
    return
  }
  func.func @transform_0(%arg0: i32) -> (i32, i32, i32) {
    %c0_i32 = arith.constant 0 : i32
    %c0_i32_0 = arith.constant 0 : i32
    %c0_i32_1 = arith.constant 0 : i32
    return %arg0, %c0_i32, %c0_i32_0 : i32, i32, i32
  }
  func.func @transform_1(%arg0: i32) -> (i32, i32, i32) {
    %c0_i32 = arith.constant 0 : i32
    %c0_i32_0 = arith.constant 0 : i32
    %c0_i32_1 = arith.constant 0 : i32
    %c0_i32_2 = arith.constant 0 : i32
    return %c0_i32, %c0_i32_0, %c0_i32_1 : i32, i32, i32
  }
  func.func @transform_2(%arg0: i32) -> (i32, i32) {
    %c0_i32 = arith.constant 0 : i32
    %c0_i32_0 = arith.constant 0 : i32
    %c0_i32_1 = arith.constant 0 : i32
    return %c0_i32, %c0_i32_0 : i32, i32
  }
  func.func @transform_3(%arg0: i32) -> (i32, i32) {
    %c0_i32 = arith.constant 0 : i32
    %c0_i32_0 = arith.constant 0 : i32
    %c0_i32_1 = arith.constant 0 : i32
    return %c0_i32, %c0_i32_0 : i32, i32
  }
  func.func @transform_4(%arg0: i32) -> (i32, i32) {
    %c0_i32 = arith.constant 0 : i32
    %c0_i32_0 = arith.constant 0 : i32
    %c0_i32_1 = arith.constant 0 : i32
    return %c0_i32, %c0_i32_0 : i32, i32
  }
  func.func @transform_5(%arg0: i32) -> (i32, i32) {
    %c0_i32 = arith.constant 0 : i32
    %c0_i32_0 = arith.constant 0 : i32
    %c0_i32_1 = arith.constant 0 : i32
    return %c0_i32, %c0_i32_0 : i32, i32
  }
  func.func @transform_6(%arg0: i32) -> (i32, i32) {
    %c0_i32 = arith.constant 0 : i32
    %c0_i32_0 = arith.constant 0 : i32
    %c0_i32_1 = arith.constant 0 : i32
    return %c0_i32, %c0_i32_0 : i32, i32
  }
  func.func @transform_7(%arg0: i32) -> (i32, i32) {
    %c0_i32 = arith.constant 0 : i32
    %c0_i32_0 = arith.constant 0 : i32
    %c0_i32_1 = arith.constant 0 : i32
    return %c0_i32, %c0_i32_0 : i32, i32
  }
  func.func @transform_8(%arg0: i32) -> (i32, i32) {
    %c0_i32 = arith.constant 0 : i32
    %c0_i32_0 = arith.constant 0 : i32
    %c0_i32_1 = arith.constant 0 : i32
    return %c0_i32, %c0_i32_0 : i32, i32
  }
  func.func @transform_9(%arg0: i32) -> (i32, i32) {
    %c0_i32 = arith.constant 0 : i32
    %c0_i32_0 = arith.constant 0 : i32
    %c0_i32_1 = arith.constant 0 : i32
    return %c0_i32, %c0_i32_0 : i32, i32
  }
  func.func @transform_10(%arg0: i32) -> (i32, i32) {
    %c0_i32 = arith.constant 0 : i32
    %c0_i32_0 = arith.constant 0 : i32
    %c0_i32_1 = arith.constant 0 : i32
    return %c0_i32, %c0_i32_0 : i32, i32
  }
  func.func @transform_11(%arg0: i32) -> (i32, i32) {
    %c0_i32 = arith.constant 0 : i32
    %c0_i32_0 = arith.constant 0 : i32
    %c0_i32_1 = arith.constant 0 : i32
    return %c0_i32, %c0_i32_0 : i32, i32
  }
  func.func @transform_12(%arg0: i32) -> (i32, i32) {
    %c0_i32 = arith.constant 0 : i32
    %c0_i32_0 = arith.constant 0 : i32
    %c0_i32_1 = arith.constant 0 : i32
    return %c0_i32, %c0_i32_0 : i32, i32
  }
  func.func @transform_13(%arg0: i32) -> (i32, i32) {
    %c0_i32 = arith.constant 0 : i32
    %c0_i32_0 = arith.constant 0 : i32
    %c0_i32_1 = arith.constant 0 : i32
    return %c0_i32, %c0_i32_0 : i32, i32
  }
  func.func @transform_14(%arg0: i32) -> (i32, i32) {
    %c0_i32 = arith.constant 0 : i32
    %c0_i32_0 = arith.constant 0 : i32
    %c0_i32_1 = arith.constant 0 : i32
    return %c0_i32, %c0_i32_0 : i32, i32
  }
  func.func @transform_15(%arg0: i32) -> (i32, i32) {
    %c0_i32 = arith.constant 0 : i32
    %c0_i32_0 = arith.constant 0 : i32
    %c0_i32_1 = arith.constant 0 : i32
    return %c0_i32, %c0_i32_0 : i32, i32
  }
  func.func @transform_16(%arg0: i32) -> (i32, i32) {
    %c0_i32 = arith.constant 0 : i32
    %c0_i32_0 = arith.constant 0 : i32
    %c0_i32_1 = arith.constant 0 : i32
    return %c0_i32, %c0_i32_0 : i32, i32
  }
  func.func @transform_17(%arg0: i32) -> (i32, i32) {
    %c0_i32 = arith.constant 0 : i32
    %c0_i32_0 = arith.constant 0 : i32
    %c0_i32_1 = arith.constant 0 : i32
    return %c0_i32, %c0_i32_0 : i32, i32
  }
  func.func @transform_18(%arg0: i32) -> (i32, i32) {
    %c0_i32 = arith.constant 0 : i32
    %c0_i32_0 = arith.constant 0 : i32
    return %arg0, %c0_i32 : i32, i32
  }
}

module attributes {stable_mosaic.version = 11 : i64} {
  func.func @transformer_classifier_kernel(%arg0: i32, %arg1: memref<2x8x32xf32, #tpu.memory_space<vmem>>, %arg2: memref<1x8x32xf32, #tpu.memory_space<vmem>>, %arg3: memref<32x384xbf16, #tpu.memory_space<vmem>>, %arg4: memref<1x384xf32, #tpu.memory_space<vmem>>, %arg5: memref<128x32xbf16, #tpu.memory_space<vmem>>, %arg6: memref<1x32xf32, #tpu.memory_space<vmem>>, %arg7: memref<1x32xf32, #tpu.memory_space<vmem>>, %arg8: memref<1x32xf32, #tpu.memory_space<vmem>>, %arg9: memref<32x128xbf16, #tpu.memory_space<vmem>>, %arg10: memref<1x128xf32, #tpu.memory_space<vmem>>, %arg11: memref<128x32xbf16, #tpu.memory_space<vmem>>, %arg12: memref<1x32xf32, #tpu.memory_space<vmem>>, %arg13: memref<1x32xf32, #tpu.memory_space<vmem>>, %arg14: memref<1x32xf32, #tpu.memory_space<vmem>>, %arg15: memref<32x128xbf16, #tpu.memory_space<vmem>>, %arg16: memref<1x128xf32, #tpu.memory_space<vmem>>, %arg17: memref<128x128xbf16, #tpu.memory_space<vmem>>, %arg18: memref<1x128xf32, #tpu.memory_space<vmem>>, %arg19: memref<2x128xf32, #tpu.memory_space<vmem>>) attributes {dimension_semantics = [#tpu.dimension_semantics<parallel>], iteration_bounds = array<i64: 1>, scalar_prefetch = 0 : i64, scratch_operands = 0 : i64, tpu.core_type = #tpu.core_type<tc>, window_params = [{transform_indices = @transform_0, window_bounds = array<i64: 2, 8, 32>}, {pipeline_mode = #tpu.pipeline_mode<synchronous>, transform_indices = @transform_1, window_bounds = array<i64: 1, 8, 32>}, {pipeline_mode = #tpu.pipeline_mode<synchronous>, transform_indices = @transform_2, window_bounds = array<i64: 32, 384>}, {pipeline_mode = #tpu.pipeline_mode<synchronous>, transform_indices = @transform_3, window_bounds = array<i64: 1, 384>}, {pipeline_mode = #tpu.pipeline_mode<synchronous>, transform_indices = @transform_4, window_bounds = array<i64: 128, 32>}, {pipeline_mode = #tpu.pipeline_mode<synchronous>, transform_indices = @transform_5, window_bounds = array<i64: 1, 32>}, {pipeline_mode = #tpu.pipeline_mode<synchronous>, transform_indices = @transform_6, window_bounds = array<i64: 1, 32>}, {pipeline_mode = #tpu.pipeline_mode<synchronous>, transform_indices = @transform_7, window_bounds = array<i64: 1, 32>}, {pipeline_mode = #tpu.pipeline_mode<synchronous>, transform_indices = @transform_8, window_bounds = array<i64: 32, 128>}, {pipeline_mode = #tpu.pipeline_mode<synchronous>, transform_indices = @transform_9, window_bounds = array<i64: 1, 128>}, {pipeline_mode = #tpu.pipeline_mode<synchronous>, transform_indices = @transform_10, window_bounds = array<i64: 128, 32>}, {pipeline_mode = #tpu.pipeline_mode<synchronous>, transform_indices = @transform_11, window_bounds = array<i64: 1, 32>}, {pipeline_mode = #tpu.pipeline_mode<synchronous>, transform_indices = @transform_12, window_bounds = array<i64: 1, 32>}, {pipeline_mode = #tpu.pipeline_mode<synchronous>, transform_indices = @transform_13, window_bounds = array<i64: 1, 32>}, {pipeline_mode = #tpu.pipeline_mode<synchronous>, transform_indices = @transform_14, window_bounds = array<i64: 32, 128>}, {pipeline_mode = #tpu.pipeline_mode<synchronous>, transform_indices = @transform_15, window_bounds = array<i64: 1, 128>}, {pipeline_mode = #tpu.pipeline_mode<synchronous>, transform_indices = @transform_16, window_bounds = array<i64: 128, 128>}, {pipeline_mode = #tpu.pipeline_mode<synchronous>, transform_indices = @transform_17, window_bounds = array<i64: 1, 128>}, {transform_indices = @transform_18, window_bounds = array<i64: 2, 128>}]} {
    %c0 = arith.constant 0 : index
    %c0_0 = arith.constant 0 : index
    %c0_1 = arith.constant 0 : index
    %0 = vector.load %arg1[%c0, %c0_0, %c0_1] : memref<2x8x32xf32, #tpu.memory_space<vmem>>, vector<2x8x32xf32>
    %c0_2 = arith.constant 0 : index
    %c0_3 = arith.constant 0 : index
    %c0_4 = arith.constant 0 : index
    %1 = vector.load %arg2[%c0_2, %c0_3, %c0_4] : memref<1x8x32xf32, #tpu.memory_space<vmem>>, vector<1x8x32xf32>
    %2 = vector.shape_cast %1 : vector<1x8x32xf32> to vector<8x32xf32>
    %3 = vector.shape_cast %2 : vector<8x32xf32> to vector<1x8x32xf32>
    %4 = vector.broadcast %3 : vector<1x8x32xf32> to vector<2x8x32xf32>
    %5 = arith.addf %0, %4 : vector<2x8x32xf32>
    %6 = vector.shape_cast %5 : vector<2x8x32xf32> to vector<16x32xf32>
    %7 = arith.truncf %6 : vector<16x32xf32> to vector<16x32xbf16>
    %c0_5 = arith.constant 0 : index
    %c0_6 = arith.constant 0 : index
    %8 = vector.load %arg3[%c0_5, %c0_6] : memref<32x384xbf16, #tpu.memory_space<vmem>>, vector<32x384xbf16>
    %cst = arith.constant dense<0.000000e+00> : vector<16x384xf32>
    %9 = tpu.matmul %7, %8, %cst {dimension_numbers = #tpu.dot_dimension_numbers<[1], [0], [0], [1], [0, 0, 1, 1], [], []>} : vector<16x32xbf16>, vector<32x384xbf16>, vector<16x384xf32> -> vector<16x384xf32>
    %c0_7 = arith.constant 0 : index
    %c0_8 = arith.constant 0 : index
    %10 = vector.load %arg4[%c0_7, %c0_8] : memref<1x384xf32, #tpu.memory_space<vmem>>, vector<1x384xf32>
    %11 = vector.broadcast %10 : vector<1x384xf32> to vector<16x384xf32>
    %12 = arith.addf %9, %11 : vector<16x384xf32>
    %13 = vector.extract_strided_slice %12 {offsets = [0, 0], sizes = [16, 128], strides = [1, 1]} : vector<16x384xf32> to vector<16x128xf32>
    %14 = vector.shape_cast %13 : vector<16x128xf32> to vector<2x8x128xf32>
    %15 = vector.extract_strided_slice %12 {offsets = [0, 128], sizes = [16, 128], strides = [1, 1]} : vector<16x384xf32> to vector<16x128xf32>
    %16 = vector.shape_cast %15 : vector<16x128xf32> to vector<2x8x128xf32>
    %17 = vector.extract_strided_slice %12 {offsets = [0, 256], sizes = [16, 128], strides = [1, 1]} : vector<16x384xf32> to vector<16x128xf32>
    %18 = vector.shape_cast %17 : vector<16x128xf32> to vector<2x8x128xf32>
    %19 = arith.truncf %14 : vector<2x8x128xf32> to vector<2x8x128xbf16>
    %20 = arith.truncf %16 : vector<2x8x128xf32> to vector<2x8x128xbf16>
    "tpu.trace_start"() <{level = 10 : i32, message = "bqd,bkd->bqk"}> : () -> ()
    %cst_9 = arith.constant dense<0.000000e+00> : vector<2x8x8xf32>
    %21 = tpu.matmul %19, %20, %cst_9 {dimension_numbers = #tpu.dot_dimension_numbers<[2], [2], [1], [1], [0, 0, 0, 1, 1, 1], [0], [0]>} : vector<2x8x128xbf16>, vector<2x8x128xbf16>, vector<2x8x8xf32> -> vector<2x8x8xf32>
    "tpu.trace_stop"() : () -> ()
    %cst_10 = arith.constant dense<0xFF800000> : vector<2x8xf32>
    %22 = vector.multi_reduction <maximumf>, %21, %cst_10 [2] : vector<2x8x8xf32> to vector<2x8xf32>
    %23 = vector.shape_cast %22 : vector<2x8xf32> to vector<2x8x1xf32>
    %24 = vector.broadcast %23 : vector<2x8x1xf32> to vector<2x8x8xf32>
    %25 = arith.subf %21, %24 : vector<2x8x8xf32>
    %26 = math.exp %25 : vector<2x8x8xf32>
    %cst_11 = arith.constant dense<0.000000e+00> : vector<2x8xf32>
    %27 = vector.multi_reduction <add>, %26, %cst_11 [2] : vector<2x8x8xf32> to vector<2x8xf32>
    %28 = vector.shape_cast %27 : vector<2x8xf32> to vector<2x8x1xf32>
    %29 = vector.broadcast %28 : vector<2x8x1xf32> to vector<2x8x8xf32>
    %30 = arith.divf %26, %29 : vector<2x8x8xf32>
    %31 = arith.truncf %30 : vector<2x8x8xf32> to vector<2x8x8xbf16>
    %32 = arith.truncf %18 : vector<2x8x128xf32> to vector<2x8x128xbf16>
    "tpu.trace_start"() <{level = 10 : i32, message = "bqk,bkd->bqd"}> : () -> ()
    %cst_12 = arith.constant dense<0.000000e+00> : vector<2x8x128xf32>
    %33 = tpu.matmul %31, %32, %cst_12 {dimension_numbers = #tpu.dot_dimension_numbers<[2], [1], [1], [2], [0, 0, 0, 1, 1, 2], [0], [0]>} : vector<2x8x8xbf16>, vector<2x8x128xbf16>, vector<2x8x128xf32> -> vector<2x8x128xf32>
    "tpu.trace_stop"() : () -> ()
    %34 = vector.shape_cast %33 : vector<2x8x128xf32> to vector<16x128xf32>
    %35 = arith.truncf %34 : vector<16x128xf32> to vector<16x128xbf16>
    %c0_13 = arith.constant 0 : index
    %c0_14 = arith.constant 0 : index
    %36 = vector.load %arg5[%c0_13, %c0_14] : memref<128x32xbf16, #tpu.memory_space<vmem>>, vector<128x32xbf16>
    %cst_15 = arith.constant dense<0.000000e+00> : vector<16x32xf32>
    %37 = tpu.matmul %35, %36, %cst_15 {dimension_numbers = #tpu.dot_dimension_numbers<[1], [0], [0], [1], [0, 0, 1, 1], [], []>} : vector<16x128xbf16>, vector<128x32xbf16>, vector<16x32xf32> -> vector<16x32xf32>
    %c0_16 = arith.constant 0 : index
    %c0_17 = arith.constant 0 : index
    %38 = vector.load %arg6[%c0_16, %c0_17] : memref<1x32xf32, #tpu.memory_space<vmem>>, vector<1x32xf32>
    %39 = vector.broadcast %38 : vector<1x32xf32> to vector<16x32xf32>
    %40 = arith.addf %37, %39 : vector<16x32xf32>
    %41 = arith.addf %6, %40 : vector<16x32xf32>
    %c0_18 = arith.constant 0 : index
    %c0_19 = arith.constant 0 : index
    %42 = vector.load %arg7[%c0_18, %c0_19] : memref<1x32xf32, #tpu.memory_space<vmem>>, vector<1x32xf32>
    %c0_20 = arith.constant 0 : index
    %c0_21 = arith.constant 0 : index
    %43 = vector.load %arg8[%c0_20, %c0_21] : memref<1x32xf32, #tpu.memory_space<vmem>>, vector<1x32xf32>
    %cst_22 = arith.constant dense<0.000000e+00> : vector<16xf32>
    %44 = vector.multi_reduction <add>, %41, %cst_22 [1] : vector<16x32xf32> to vector<16xf32>
    %45 = vector.shape_cast %44 : vector<16xf32> to vector<16x1xf32>
    %cst_23 = arith.constant 3.200000e+01 : f32
    %46 = vector.broadcast %cst_23 : f32 to vector<16x1xf32>
    %47 = arith.divf %45, %46 : vector<16x1xf32>
    %48 = vector.broadcast %47 : vector<16x1xf32> to vector<16x32xf32>
    %49 = arith.subf %41, %48 : vector<16x32xf32>
    %50 = arith.mulf %49, %49 : vector<16x32xf32>
    %cst_24 = arith.constant dense<0.000000e+00> : vector<16xf32>
    %51 = vector.multi_reduction <add>, %50, %cst_24 [1] : vector<16x32xf32> to vector<16xf32>
    %52 = vector.shape_cast %51 : vector<16xf32> to vector<16x1xf32>
    %cst_25 = arith.constant 3.200000e+01 : f32
    %53 = vector.broadcast %cst_25 : f32 to vector<16x1xf32>
    %54 = arith.divf %52, %53 : vector<16x1xf32>
    %55 = vector.broadcast %47 : vector<16x1xf32> to vector<16x32xf32>
    %56 = arith.subf %41, %55 : vector<16x32xf32>
    %cst_26 = arith.constant 9.99999974E-6 : f32
    %57 = vector.broadcast %cst_26 : f32 to vector<16x1xf32>
    %58 = arith.addf %54, %57 : vector<16x1xf32>
    %59 = math.rsqrt %58 : vector<16x1xf32>
    %60 = vector.broadcast %59 : vector<16x1xf32> to vector<16x32xf32>
    %61 = arith.mulf %56, %60 : vector<16x32xf32>
    %62 = vector.broadcast %42 : vector<1x32xf32> to vector<16x32xf32>
    %63 = arith.mulf %61, %62 : vector<16x32xf32>
    %64 = vector.broadcast %43 : vector<1x32xf32> to vector<16x32xf32>
    %65 = arith.addf %63, %64 : vector<16x32xf32>
    %66 = arith.truncf %65 : vector<16x32xf32> to vector<16x32xbf16>
    %c0_27 = arith.constant 0 : index
    %c0_28 = arith.constant 0 : index
    %67 = vector.load %arg9[%c0_27, %c0_28] : memref<32x128xbf16, #tpu.memory_space<vmem>>, vector<32x128xbf16>
    %cst_29 = arith.constant dense<0.000000e+00> : vector<16x128xf32>
    %68 = tpu.matmul %66, %67, %cst_29 {dimension_numbers = #tpu.dot_dimension_numbers<[1], [0], [0], [1], [0, 0, 1, 1], [], []>} : vector<16x32xbf16>, vector<32x128xbf16>, vector<16x128xf32> -> vector<16x128xf32>
    %c0_30 = arith.constant 0 : index
    %c0_31 = arith.constant 0 : index
    %69 = vector.load %arg10[%c0_30, %c0_31] : memref<1x128xf32, #tpu.memory_space<vmem>>, vector<1x128xf32>
    %70 = vector.broadcast %69 : vector<1x128xf32> to vector<16x128xf32>
    %71 = arith.addf %68, %70 : vector<16x128xf32>
    %cst_32 = arith.constant 0.000000e+00 : f32
    %72 = vector.broadcast %cst_32 : f32 to vector<16x128xf32>
    %73 = arith.maximumf %71, %72 : vector<16x128xf32>
    %74 = arith.truncf %73 : vector<16x128xf32> to vector<16x128xbf16>
    %c0_33 = arith.constant 0 : index
    %c0_34 = arith.constant 0 : index
    %75 = vector.load %arg11[%c0_33, %c0_34] : memref<128x32xbf16, #tpu.memory_space<vmem>>, vector<128x32xbf16>
    %cst_35 = arith.constant dense<0.000000e+00> : vector<16x32xf32>
    %76 = tpu.matmul %74, %75, %cst_35 {dimension_numbers = #tpu.dot_dimension_numbers<[1], [0], [0], [1], [0, 0, 1, 1], [], []>} : vector<16x128xbf16>, vector<128x32xbf16>, vector<16x32xf32> -> vector<16x32xf32>
    %c0_36 = arith.constant 0 : index
    %c0_37 = arith.constant 0 : index
    %77 = vector.load %arg12[%c0_36, %c0_37] : memref<1x32xf32, #tpu.memory_space<vmem>>, vector<1x32xf32>
    %78 = vector.broadcast %77 : vector<1x32xf32> to vector<16x32xf32>
    %79 = arith.addf %76, %78 : vector<16x32xf32>
    %80 = arith.addf %65, %79 : vector<16x32xf32>
    %c0_38 = arith.constant 0 : index
    %c0_39 = arith.constant 0 : index
    %81 = vector.load %arg13[%c0_38, %c0_39] : memref<1x32xf32, #tpu.memory_space<vmem>>, vector<1x32xf32>
    %c0_40 = arith.constant 0 : index
    %c0_41 = arith.constant 0 : index
    %82 = vector.load %arg14[%c0_40, %c0_41] : memref<1x32xf32, #tpu.memory_space<vmem>>, vector<1x32xf32>
    %cst_42 = arith.constant dense<0.000000e+00> : vector<16xf32>
    %83 = vector.multi_reduction <add>, %80, %cst_42 [1] : vector<16x32xf32> to vector<16xf32>
    %84 = vector.shape_cast %83 : vector<16xf32> to vector<16x1xf32>
    %cst_43 = arith.constant 3.200000e+01 : f32
    %85 = vector.broadcast %cst_43 : f32 to vector<16x1xf32>
    %86 = arith.divf %84, %85 : vector<16x1xf32>
    %87 = vector.broadcast %86 : vector<16x1xf32> to vector<16x32xf32>
    %88 = arith.subf %80, %87 : vector<16x32xf32>
    %89 = arith.mulf %88, %88 : vector<16x32xf32>
    %cst_44 = arith.constant dense<0.000000e+00> : vector<16xf32>
    %90 = vector.multi_reduction <add>, %89, %cst_44 [1] : vector<16x32xf32> to vector<16xf32>
    %91 = vector.shape_cast %90 : vector<16xf32> to vector<16x1xf32>
    %cst_45 = arith.constant 3.200000e+01 : f32
    %92 = vector.broadcast %cst_45 : f32 to vector<16x1xf32>
    %93 = arith.divf %91, %92 : vector<16x1xf32>
    %94 = vector.broadcast %86 : vector<16x1xf32> to vector<16x32xf32>
    %95 = arith.subf %80, %94 : vector<16x32xf32>
    %cst_46 = arith.constant 9.99999974E-6 : f32
    %96 = vector.broadcast %cst_46 : f32 to vector<16x1xf32>
    %97 = arith.addf %93, %96 : vector<16x1xf32>
    %98 = math.rsqrt %97 : vector<16x1xf32>
    %99 = vector.broadcast %98 : vector<16x1xf32> to vector<16x32xf32>
    %100 = arith.mulf %95, %99 : vector<16x32xf32>
    %101 = vector.broadcast %81 : vector<1x32xf32> to vector<16x32xf32>
    %102 = arith.mulf %100, %101 : vector<16x32xf32>
    %103 = vector.broadcast %82 : vector<1x32xf32> to vector<16x32xf32>
    %104 = arith.addf %102, %103 : vector<16x32xf32>
    %105 = vector.shape_cast %104 : vector<16x32xf32> to vector<2x8x32xf32>
    %cst_47 = arith.constant dense<0.000000e+00> : vector<2x32xf32>
    %106 = vector.multi_reduction <add>, %105, %cst_47 [1] : vector<2x8x32xf32> to vector<2x32xf32>
    %cst_48 = arith.constant 8.000000e+00 : f32
    %107 = vector.broadcast %cst_48 : f32 to vector<2x32xf32>
    %108 = arith.divf %106, %107 : vector<2x32xf32>
    %109 = arith.truncf %108 : vector<2x32xf32> to vector<2x32xbf16>
    %c0_49 = arith.constant 0 : index
    %c0_50 = arith.constant 0 : index
    %110 = vector.load %arg15[%c0_49, %c0_50] : memref<32x128xbf16, #tpu.memory_space<vmem>>, vector<32x128xbf16>
    %cst_51 = arith.constant dense<0.000000e+00> : vector<2x128xf32>
    %111 = tpu.matmul %109, %110, %cst_51 {dimension_numbers = #tpu.dot_dimension_numbers<[1], [0], [0], [1], [0, 0, 1, 1], [], []>} : vector<2x32xbf16>, vector<32x128xbf16>, vector<2x128xf32> -> vector<2x128xf32>
    %c0_52 = arith.constant 0 : index
    %c0_53 = arith.constant 0 : index
    %112 = vector.load %arg16[%c0_52, %c0_53] : memref<1x128xf32, #tpu.memory_space<vmem>>, vector<1x128xf32>
    %113 = vector.broadcast %112 : vector<1x128xf32> to vector<2x128xf32>
    %114 = arith.addf %111, %113 : vector<2x128xf32>
    %cst_54 = arith.constant 0.000000e+00 : f32
    %115 = vector.broadcast %cst_54 : f32 to vector<2x128xf32>
    %116 = arith.maximumf %114, %115 : vector<2x128xf32>
    %117 = arith.truncf %116 : vector<2x128xf32> to vector<2x128xbf16>
    %c0_55 = arith.constant 0 : index
    %c0_56 = arith.constant 0 : index
    %118 = vector.load %arg17[%c0_55, %c0_56] : memref<128x128xbf16, #tpu.memory_space<vmem>>, vector<128x128xbf16>
    %cst_57 = arith.constant dense<0.000000e+00> : vector<2x128xf32>
    %119 = tpu.matmul %117, %118, %cst_57 {dimension_numbers = #tpu.dot_dimension_numbers<[1], [0], [0], [1], [0, 0, 1, 1], [], []>} : vector<2x128xbf16>, vector<128x128xbf16>, vector<2x128xf32> -> vector<2x128xf32>
    %c0_58 = arith.constant 0 : index
    %c0_59 = arith.constant 0 : index
    %120 = vector.load %arg18[%c0_58, %c0_59] : memref<1x128xf32, #tpu.memory_space<vmem>>, vector<1x128xf32>
    %121 = vector.broadcast %120 : vector<1x128xf32> to vector<2x128xf32>
    %122 = arith.addf %119, %121 : vector<2x128xf32>
    %c0_60 = arith.constant 0 : index
    %c0_61 = arith.constant 0 : index
    %123 = vector.load %arg19[%c0_60, %c0_61] : memref<2x128xf32, #tpu.memory_space<vmem>>, vector<2x128xf32>
    tpu.vector_store %arg19[%c0_60, %c0_61], %122 {strides = array<i32>} : memref<2x128xf32, #tpu.memory_space<vmem>>, vector<2x128xf32>,
    return
  }
  func.func @transform_0(%arg0: i32) -> (i32, i32, i32) {
    %c0_i32 = arith.constant 0 : i32
    %c0_i32_0 = arith.constant 0 : i32
    %c0_i32_1 = arith.constant 0 : i32
    return %arg0, %c0_i32, %c0_i32_0 : i32, i32, i32
  }
  func.func @transform_1(%arg0: i32) -> (i32, i32, i32) {
    %c0_i32 = arith.constant 0 : i32
    %c0_i32_0 = arith.constant 0 : i32
    %c0_i32_1 = arith.constant 0 : i32
    %c0_i32_2 = arith.constant 0 : i32
    return %c0_i32, %c0_i32_0, %c0_i32_1 : i32, i32, i32
  }
  func.func @transform_2(%arg0: i32) -> (i32, i32) {
    %c0_i32 = arith.constant 0 : i32
    %c0_i32_0 = arith.constant 0 : i32
    %c0_i32_1 = arith.constant 0 : i32
    return %c0_i32, %c0_i32_0 : i32, i32
  }
  func.func @transform_3(%arg0: i32) -> (i32, i32) {
    %c0_i32 = arith.constant 0 : i32
    %c0_i32_0 = arith.constant 0 : i32
    %c0_i32_1 = arith.constant 0 : i32
    return %c0_i32, %c0_i32_0 : i32, i32
  }
  func.func @transform_4(%arg0: i32) -> (i32, i32) {
    %c0_i32 = arith.constant 0 : i32
    %c0_i32_0 = arith.constant 0 : i32
    %c0_i32_1 = arith.constant 0 : i32
    return %c0_i32, %c0_i32_0 : i32, i32
  }
  func.func @transform_5(%arg0: i32) -> (i32, i32) {
    %c0_i32 = arith.constant 0 : i32
    %c0_i32_0 = arith.constant 0 : i32
    %c0_i32_1 = arith.constant 0 : i32
    return %c0_i32, %c0_i32_0 : i32, i32
  }
  func.func @transform_6(%arg0: i32) -> (i32, i32) {
    %c0_i32 = arith.constant 0 : i32
    %c0_i32_0 = arith.constant 0 : i32
    %c0_i32_1 = arith.constant 0 : i32
    return %c0_i32, %c0_i32_0 : i32, i32
  }
  func.func @transform_7(%arg0: i32) -> (i32, i32) {
    %c0_i32 = arith.constant 0 : i32
    %c0_i32_0 = arith.constant 0 : i32
    %c0_i32_1 = arith.constant 0 : i32
    return %c0_i32, %c0_i32_0 : i32, i32
  }
  func.func @transform_8(%arg0: i32) -> (i32, i32) {
    %c0_i32 = arith.constant 0 : i32
    %c0_i32_0 = arith.constant 0 : i32
    %c0_i32_1 = arith.constant 0 : i32
    return %c0_i32, %c0_i32_0 : i32, i32
  }
  func.func @transform_9(%arg0: i32) -> (i32, i32) {
    %c0_i32 = arith.constant 0 : i32
    %c0_i32_0 = arith.constant 0 : i32
    %c0_i32_1 = arith.constant 0 : i32
    return %c0_i32, %c0_i32_0 : i32, i32
  }
  func.func @transform_10(%arg0: i32) -> (i32, i32) {
    %c0_i32 = arith.constant 0 : i32
    %c0_i32_0 = arith.constant 0 : i32
    %c0_i32_1 = arith.constant 0 : i32
    return %c0_i32, %c0_i32_0 : i32, i32
  }
  func.func @transform_11(%arg0: i32) -> (i32, i32) {
    %c0_i32 = arith.constant 0 : i32
    %c0_i32_0 = arith.constant 0 : i32
    %c0_i32_1 = arith.constant 0 : i32
    return %c0_i32, %c0_i32_0 : i32, i32
  }
  func.func @transform_12(%arg0: i32) -> (i32, i32) {
    %c0_i32 = arith.constant 0 : i32
    %c0_i32_0 = arith.constant 0 : i32
    %c0_i32_1 = arith.constant 0 : i32
    return %c0_i32, %c0_i32_0 : i32, i32
  }
  func.func @transform_13(%arg0: i32) -> (i32, i32) {
    %c0_i32 = arith.constant 0 : i32
    %c0_i32_0 = arith.constant 0 : i32
    %c0_i32_1 = arith.constant 0 : i32
    return %c0_i32, %c0_i32_0 : i32, i32
  }
  func.func @transform_14(%arg0: i32) -> (i32, i32) {
    %c0_i32 = arith.constant 0 : i32
    %c0_i32_0 = arith.constant 0 : i32
    %c0_i32_1 = arith.constant 0 : i32
    return %c0_i32, %c0_i32_0 : i32, i32
  }
  func.func @transform_15(%arg0: i32) -> (i32, i32) {
    %c0_i32 = arith.constant 0 : i32
    %c0_i32_0 = arith.constant 0 : i32
    %c0_i32_1 = arith.constant 0 : i32
    return %c0_i32, %c0_i32_0 : i32, i32
  }
  func.func @transform_16(%arg0: i32) -> (i32, i32) {
    %c0_i32 = arith.constant 0 : i32
    %c0_i32_0 = arith.constant 0 : i32
    %c0_i32_1 = arith.constant 0 : i32
    return %c0_i32, %c0_i32_0 : i32, i32
  }
  func.func @transform_17(%arg0: i32) -> (i32, i32) {
    %c0_i32 = arith.constant 0 : i32
    %c0_i32_0 = arith.constant 0 : i32
    %c0_i32_1 = arith.constant 0 : i32
    return %c0_i32, %c0_i32_0 : i32, i32
  }
  func.func @transform_18(%arg0: i32) -> (i32, i32) {
    %c0_i32 = arith.constant 0 : i32
    %c0_i32_0 = arith.constant 0 : i32
    return %arg0, %c0_i32 : i32, i32
  }
}

</mosaic_0001>

<llo_original>
// kernel: tpu_custom_call.1
$region0: #{tpu_custom_call.1}
  #allocation0 [shape = 'u32[]', space=smem, size = 0x4, offset = 0x4, fixed_abs, tag = 'smem constant byte address 0x4 - core index']
  #allocation1 [shape = 'u32[144,128]{1,0:T(1,128)}', space=vmem, size = 0x12000, scoped, tag = 'internal scratch']
  %s0 = inlined_call_operand.vmem [shape: f32[2,8,32], index: 0, kind: input, shape index: {}]
  %s1 = inlined_call_operand.hbm [shape: f32[1,8,32], index: 1, kind: input, shape index: {}]
  %s2 = inlined_call_operand.vmem [shape: bf16[32,384], index: 2, kind: input, shape index: {}]
  %s3 = inlined_call_operand.hbm [shape: f32[1,384], index: 3, kind: input, shape index: {}]
  %s4 = inlined_call_operand.vmem [shape: bf16[128,32], index: 4, kind: input, shape index: {}]
  %s5 = inlined_call_operand.vmem [shape: f32[1,32], index: 5, kind: input, shape index: {}]
  %s6 = inlined_call_operand.vmem [shape: f32[1,32], index: 6, kind: input, shape index: {}]
  %s7 = inlined_call_operand.vmem [shape: f32[1,32], index: 7, kind: input, shape index: {}]
  %s8 = inlined_call_operand.vmem [shape: bf16[32,128], index: 8, kind: input, shape index: {}]
  %s9 = inlined_call_operand.vmem [shape: f32[1,128], index: 9, kind: input, shape index: {}]
  %s10 = inlined_call_operand.vmem [shape: bf16[128,32], index: 10, kind: input, shape index: {}]
  %s11 = inlined_call_operand.vmem [shape: f32[1,32], index: 11, kind: input, shape index: {}]
  %s12 = inlined_call_operand.vmem [shape: f32[1,32], index: 12, kind: input, shape index: {}]
  %s13 = inlined_call_operand.vmem [shape: f32[1,32], index: 13, kind: input, shape index: {}]
  %s14 = inlined_call_operand.vmem [shape: bf16[32,128], index: 14, kind: input, shape index: {}]
  %s15 = inlined_call_operand.vmem [shape: f32[1,128], index: 15, kind: input, shape index: {}]
  %s16 = inlined_call_operand.vmem [shape: bf16[128,128], index: 16, kind: input, shape index: {}]
  %s17 = inlined_call_operand.vmem [shape: f32[1,128], index: 17, kind: input, shape index: {}]
  %s18 = inlined_call_operand.hbm [shape: f32[2,128], index: 18, kind: output, shape index: {}]
  %s19 = sld [smem:[#allocation0]]
  $region90: #{tpu_custom_call.1} parent=0
    _
  %s21 = ssub.s32 1, %s19
  %s22 = scalar_select 0, %s21, %s19
  $region1: #{tpu_custom_call.1} parent=0
    #allocation2 [shape = 'u8[4096]{0}', space=vmem, size = 0x1000, scoped, tag = 'input window, operand 1, single buffered']
    #allocation3 [shape = 's32[1]{0}', space=sflag, size = 0x4, scoped, tag = 'scoped memory for tpu_custom_call.1']
    #allocation4 [shape = 's32[1]{0}', space=sflag, size = 0x4, scoped, tag = 'scoped memory for tpu_custom_call.1']
    #allocation5 [shape = 'u8[1536]{0}', space=vmem, size = 0x800, scoped, tag = 'input window, operand 3, single buffered']
    #allocation6 [shape = 's32[1]{0}', space=sflag, size = 0x4, scoped, tag = 'scoped memory for tpu_custom_call.1']
    #allocation7 [shape = 'u8[1024]{0}', space=vmem, size = 0x400, scoped, tag = 'output window, operand 0, single buffered']
    %23 = vsyncpa [#allocation3], 0
    %24 = vsyncpa [#allocation6], 0
    %25 = vsyncpa [#allocation4], 0
    // Predicated region
    $region2: #{tpu_custom_call.1} parent=1 // pred_check
      _
    $region3: #{tpu_custom_call.1} parent=1 // pred_check_branch
      %27 = sbr.rel (0) target = $region5
    $region4: #{tpu_custom_call.1} parent=1 // pred_region
      _
    $region5: #{tpu_custom_call.1} parent=1 // pred_fallthru
      _
    // Predicated region
    $region6: #{tpu_custom_call.1} parent=1 // pred_check
      _
    $region7: #{tpu_custom_call.1} parent=1 // pred_check_branch
      %29 = sbr.rel (0) target = $region9
    $region8: #{tpu_custom_call.1} parent=1 // pred_region
      %s31 = ssub.s32 128, 128
      %32 = vsyncadd [#allocation3], %s31
      %s34 = sshll.u32 [#allocation2], 4
      %s35 = int_to_ptr.vmem [resolvable:$true] %s34
      %37 = dma.hbm_to_vmem [thread:$0]  %s1, 128, %s35, [#allocation3]
    $region9: #{tpu_custom_call.1} parent=1 // pred_fallthru
      _
    // Predicated region
    $region10: #{tpu_custom_call.1} parent=1 // pred_check
      _
    $region11: #{tpu_custom_call.1} parent=1 // pred_check_branch
      %39 = sbr.rel (0) target = $region13
    $region12: #{tpu_custom_call.1} parent=1 // pred_region
      _
    $region13: #{tpu_custom_call.1} parent=1 // pred_fallthru
      _
    // Predicated region
    $region14: #{tpu_custom_call.1} parent=1 // pred_check
      _
    $region15: #{tpu_custom_call.1} parent=1 // pred_check_branch
      %41 = sbr.rel (0) target = $region17
    $region16: #{tpu_custom_call.1} parent=1 // pred_region
      %s43 = ssub.s32 48, 48
      %44 = vsyncadd [#allocation6], %s43
      %s46 = sshll.u32 [#allocation5], 4
      %s47 = int_to_ptr.vmem [resolvable:$true] %s46
      %49 = dma.hbm_to_vmem [thread:$0]  %s3, 48, %s47, [#allocation6]
    $region17: #{tpu_custom_call.1} parent=1 // pred_fallthru
      _
    // Predicated region
    $region18: #{tpu_custom_call.1} parent=1 // pred_check
      _
    $region19: #{tpu_custom_call.1} parent=1 // pred_check_branch
      %51 = sbr.rel (0) target = $region21
    $region20: #{tpu_custom_call.1} parent=1 // pred_region
      _
    $region21: #{tpu_custom_call.1} parent=1 // pred_fallthru
      _
    // Predicated region
    $region22: #{tpu_custom_call.1} parent=1 // pred_check
      _
    $region23: #{tpu_custom_call.1} parent=1 // pred_check_branch
      %53 = sbr.rel (0) target = $region25
    $region24: #{tpu_custom_call.1} parent=1 // pred_region
      _
    $region25: #{tpu_custom_call.1} parent=1 // pred_fallthru
      _
    // Predicated region
    $region26: #{tpu_custom_call.1} parent=1 // pred_check
      _
    $region27: #{tpu_custom_call.1} parent=1 // pred_check_branch
      %55 = sbr.rel (0) target = $region29
    $region28: #{tpu_custom_call.1} parent=1 // pred_region
      _
    $region29: #{tpu_custom_call.1} parent=1 // pred_fallthru
      _
    // Predicated region
    $region30: #{tpu_custom_call.1} parent=1 // pred_check
      _
    $region31: #{tpu_custom_call.1} parent=1 // pred_check_branch
      %57 = sbr.rel (0) target = $region33
    $region32: #{tpu_custom_call.1} parent=1 // pred_region
      _
    $region33: #{tpu_custom_call.1} parent=1 // pred_fallthru
      _
    // Predicated region
    $region34: #{tpu_custom_call.1} parent=1 // pred_check
      _
    $region35: #{tpu_custom_call.1} parent=1 // pred_check_branch
      %59 = sbr.rel (0) target = $region37
    $region36: #{tpu_custom_call.1} parent=1 // pred_region
      _
    $region37: #{tpu_custom_call.1} parent=1 // pred_fallthru
      _
    // Predicated region
    $region38: #{tpu_custom_call.1} parent=1 // pred_check
      _
    $region39: #{tpu_custom_call.1} parent=1 // pred_check_branch
      %61 = sbr.rel (0) target = $region41
    $region40: #{tpu_custom_call.1} parent=1 // pred_region
      _
    $region41: #{tpu_custom_call.1} parent=1 // pred_fallthru
      _
    // Predicated region
    $region42: #{tpu_custom_call.1} parent=1 // pred_check
      _
    $region43: #{tpu_custom_call.1} parent=1 // pred_check_branch
      %63 = sbr.rel (0) target = $region45
    $region44: #{tpu_custom_call.1} parent=1 // pred_region
      _
    $region45: #{tpu_custom_call.1} parent=1 // pred_fallthru
      _
    // Predicated region
    $region46: #{tpu_custom_call.1} parent=1 // pred_check
      _
    $region47: #{tpu_custom_call.1} parent=1 // pred_check_branch
      %65 = sbr.rel (0) target = $region49
    $region48: #{tpu_custom_call.1} parent=1 // pred_region
      _
    $region49: #{tpu_custom_call.1} parent=1 // pred_fallthru
      _
    // Predicated region
    $region50: #{tpu_custom_call.1} parent=1 // pred_check
      _
    $region51: #{tpu_custom_call.1} parent=1 // pred_check_branch
      %67 = sbr.rel (0) target = $region53
    $region52: #{tpu_custom_call.1} parent=1 // pred_region
      _
    $region53: #{tpu_custom_call.1} parent=1 // pred_fallthru
      _
    // Predicated region
    $region54: #{tpu_custom_call.1} parent=1 // pred_check
      _
    $region55: #{tpu_custom_call.1} parent=1 // pred_check_branch
      %69 = sbr.rel (0) target = $region57
    $region56: #{tpu_custom_call.1} parent=1 // pred_region
      _
    $region57: #{tpu_custom_call.1} parent=1 // pred_fallthru
      _
    // Predicated region
    $region58: #{tpu_custom_call.1} parent=1 // pred_check
      _
    $region59: #{tpu_custom_call.1} parent=1 // pred_check_branch
      %71 = sbr.rel (0) target = $region61
    $region60: #{tpu_custom_call.1} parent=1 // pred_region
      _
    $region61: #{tpu_custom_call.1} parent=1 // pred_fallthru
      _
    // Predicated region
    $region62: #{tpu_custom_call.1} parent=1 // pred_check
      _
    $region63: #{tpu_custom_call.1} parent=1 // pred_check_branch
      %73 = sbr.rel (0) target = $region65
    $region64: #{tpu_custom_call.1} parent=1 // pred_region
      _
    $region65: #{tpu_custom_call.1} parent=1 // pred_fallthru
      _
    // Predicated region
    $region66: #{tpu_custom_call.1} parent=1 // pred_check
      _
    $region67: #{tpu_custom_call.1} parent=1 // pred_check_branch
      %75 = sbr.rel (0) target = $region69
    $region68: #{tpu_custom_call.1} parent=1 // pred_region
      _
    $region69: #{tpu_custom_call.1} parent=1 // pred_fallthru
      _
    // Predicated region
    $region70: #{tpu_custom_call.1} parent=1 // pred_check
      _
    $region71: #{tpu_custom_call.1} parent=1 // pred_check_branch
      %77 = sbr.rel (0) target = $region73
    $region72: #{tpu_custom_call.1} parent=1 // pred_region
      _
    $region73: #{tpu_custom_call.1} parent=1 // pred_fallthru
      _
    // Predicated region
    $region74: #{tpu_custom_call.1} parent=1 // pred_check
      _
    $region75: #{tpu_custom_call.1} parent=1 // pred_check_branch
      %79 = sbr.rel (0) target = $region77
    $region76: #{tpu_custom_call.1} parent=1 // pred_region
      %80 = dma.done [#allocation3], 128
    $region77: #{tpu_custom_call.1} parent=1 // pred_fallthru
      _
    // Predicated region
    $region78: #{tpu_custom_call.1} parent=1 // pred_check
      _
    $region79: #{tpu_custom_call.1} parent=1 // pred_check_branch
      %82 = sbr.rel (0) target = $region81
    $region80: #{tpu_custom_call.1} parent=1 // pred_region
      %83 = dma.done [#allocation6], 48
    $region81: #{tpu_custom_call.1} parent=1 // pred_fallthru
      _
    %v85 = vld [vmem:[%s0] sm:$0xff]
    %v86 = vld [vmem:[%s0 + $0x8] sm:$0xff]
    %v87 = vld [vmem:[#allocation2] sm:$0xff]
    %v88 = vadd.f32 %v85, %v87
    %v89 = vadd.f32 %v86, %v87
    %v90 = vpack.c.bf16 %v89, %v88
    %v91 = vld [vmem:[%s2] sm:$0xff]
    %v92 = vld [vmem:[%s2 + $0x8] sm:$0xf]
    %v93 = vld [vmem:[%s2 + $0xc] sm:$0xff]
    %v94 = vld [vmem:[%s2 + $0x14] sm:$0xf]
    %v95 = vld [vmem:[%s2 + $0x18] sm:$0xff]
    %v96 = vld [vmem:[%s2 + $0x20] sm:$0xf]
    %v97 = vld [vmem:[%s2 + $0x24] sm:$0xff]
    %v98 = vld [vmem:[%s2 + $0x2c] sm:$0xf]
    %v99 = vld [vmem:[#allocation5] sm:$0x7]
    %v101 = vlaneseq
    %v102 = vshrl.u32 %v101, 7
    %v103 = vsub.s32 0, %v102
    %v104 = vrot.slane %v99, %v103
    %v105 = vlaneseq
    %v106 = vshrl.u32 %v105, 7
    %v107 = vsub.s32 1, %v106
    %v108 = vrot.slane %v99, %v107
    %v109 = vlaneseq
    %v110 = vshrl.u32 %v109, 7
    %v111 = vsub.s32 2, %v110
    %v112 = vrot.slane %v99, %v111
    %v124 = vunpack.c.l.b16 %v91
    %v125 = vunpack.c.h.b16 %v91
    %v126 = vunpack.c.l.b16 %v92
    %v127 = vunpack.c.l.b16 %v93
    %v128 = vunpack.c.h.b16 %v93
    %v129 = vunpack.c.l.b16 %v94
    %v130 = vunpack.c.l.b16 %v95
    %v131 = vunpack.c.h.b16 %v95
    %v132 = vunpack.c.l.b16 %v96
    %v133 = vunpack.c.l.b16 %v97
    %v134 = vunpack.c.h.b16 %v97
    %v135 = vunpack.c.l.b16 %v98
    %v136 = vpack.c.b16 %v127, %v124
    %v137 = vpack.c.b16 %v128, %v125
    %v138 = vpack.c.b16 %v129, %v126
    %v139 = vpack.c.b16 %v133, %v130
    %v140 = vpack.c.b16 %v134, %v131
    %v141 = vpack.c.b16 %v135, %v132
    %vm148 = vcmask 261120
    %v150 = vsel %vm148, %v90, 0
    %152 = vmatprep.subr.bf16.mxu0 %v137
    %153 = vmatpush1.bf16.msra.mxu0 %v136
    %154 = vmatprep.subr.bf16.mxu0 %v140
    %155 = vmatpush1.bf16.msra.mxu0 %v139
    %156 = vmatprep.subr.bf16.mxu0 0
    %157 = vmatpush1.bf16.msra.mxu0 0
    %158 = vmatprep.subr.bf16.mxu0 0
    %159 = vmatpush1.bf16.msra.mxu0 0
    %160 = vmatprep.subr.bf16.mxu0 0
    %161 = vmatpush1.bf16.msra.mxu0 0
    %162 = vmatprep.subr.bf16.mxu0 0
    %163 = vmatpush1.bf16.msra.mxu0 0
    %164 = vmatprep.subr.bf16.mxu0 0
    %165 = vmatpush1.bf16.msra.mxu0 0
    %166 = vmatprep.subr.bf16.mxu0 0
    %167 = vmatpush1.bf16.msra.mxu0 0
    %168 = vmatprep.subr.bf16.mxu0 0
    %169 = vmatpush1.bf16.msra.mxu0 0
    %170 = vmatprep.subr.bf16.mxu0 0
    %171 = vmatpush1.bf16.msra.mxu0 0
    %172 = vmatprep.subr.bf16.mxu0 0
    %173 = vmatpush1.bf16.msra.mxu0 0
    %174 = vmatprep.subr.bf16.mxu0 0
    %175 = vmatpush1.bf16.msra.mxu0 0
    %176 = vmatprep.subr.bf16.mxu0 0
    %177 = vmatpush1.bf16.msra.mxu0 0
    %178 = vmatprep.subr.bf16.mxu0 0
    %179 = vmatpush1.bf16.msra.mxu0 0
    %180 = vmatprep.subr.bf16.mxu0 0
    %181 = vmatpush1.bf16.msra.mxu0 0
    %182 = vmatprep.subr.bf16.mxu0 0
    %183 = vmatpush1.bf16.msra.mxu0 0
    %184 = vmatprep.mubr.bf16.mxu0 0
    %185 = vmatmul.mubr.bf16.gmra.mrb[0].mxu0 %v150
    %v186 = vpop.f32.mrb[0].mxu0
    %v187 = vadd.f32 %v104, %v186
    %v188 = vpop.f32.mrb[0].mxu0
    %v189 = vadd.f32 %v108, %v188
    %v190 = vpop.f32.mrb[0].mxu0
    %v191 = vadd.f32 %v104, %v190
    %v192 = vpop.f32.mrb[0].mxu0
    %v193 = vadd.f32 %v108, %v192
    %194 = vdwg.mxu0
    %195 = vmatprep.subr.bf16.mxu0 0
    %196 = vmatpush1.bf16.msra.mxu0 %v138
    %197 = vmatprep.subr.bf16.mxu0 0
    %198 = vmatpush1.bf16.msra.mxu0 %v141
    %199 = vmatprep.subr.bf16.mxu0 0
    %200 = vmatpush1.bf16.msra.mxu0 0
    %201 = vmatprep.subr.bf16.mxu0 0
    %202 = vmatpush1.bf16.msra.mxu0 0
    %203 = vmatprep.subr.bf16.mxu0 0
    %204 = vmatpush1.bf16.msra.mxu0 0
    %205 = vmatprep.subr.bf16.mxu0 0
    %206 = vmatpush1.bf16.msra.mxu0 0
    %207 = vmatprep.subr.bf16.mxu0 0
    %208 = vmatpush1.bf16.msra.mxu0 0
    %209 = vmatprep.subr.bf16.mxu0 0
    %210 = vmatpush1.bf16.msra.mxu0 0
    %211 = vmatprep.subr.bf16.mxu0 0
    %212 = vmatpush1.bf16.msra.mxu0 0
    %213 = vmatprep.subr.bf16.mxu0 0
    %214 = vmatpush1.bf16.msra.mxu0 0
    %215 = vmatprep.subr.bf16.mxu0 0
    %216 = vmatpush1.bf16.msra.mxu0 0
    %217 = vmatprep.subr.bf16.mxu0 0
    %218 = vmatpush1.bf16.msra.mxu0 0
    %219 = vmatprep.subr.bf16.mxu0 0
    %220 = vmatpush1.bf16.msra.mxu0 0
    %221 = vmatprep.subr.bf16.mxu0 0
    %222 = vmatpush1.bf16.msra.mxu0 0
    %223 = vmatprep.subr.bf16.mxu0 0
    %224 = vmatpush1.bf16.msra.mxu0 0
    %225 = vmatprep.subr.bf16.mxu0 0
    %226 = vmatpush1.bf16.msra.mxu0 0
    %227 = vmatprep.mubr.bf16.mxu0 0
    %228 = vmatmul.mubr.bf16.gmra.mrb[0].mxu0 %v150
    %v229 = vpop.f32.mrb[0].mxu0
    %v230 = vadd.f32 %v112, %v229
    %v231 = vpop.f32.mrb[0].mxu0
    %v232 = vpop.f32.mrb[0].mxu0
    %v233 = vadd.f32 %v112, %v232
    %v234 = vpop.f32.mrb[0].mxu0
    %235 = vdwg.mxu0
    %v236 = vpack.c.bf16 %v187, %v187
    %v237 = vpack.c.bf16 %v191, %v191
    %v238 = vpack.c.bf16 %v189, %v189
    %v239 = vpack.c.bf16 %v193, %v193
    %240 = vmatprep.subr.bf16.mxu0 0
    %241 = vmatpush1.bf16.xpose.msra.mxu0 %v238
    %242 = vmatprep.subr.bf16.mxu0 0
    %243 = vmatpush1.bf16.xpose.msra.mxu0 0
    %244 = vmatprep.subr.bf16.mxu0 0
    %245 = vmatpush1.bf16.xpose.msra.mxu0 0
    %246 = vmatprep.subr.bf16.mxu0 0
    %247 = vmatpush1.bf16.xpose.msra.mxu0 0
    %248 = vmatprep.subr.bf16.mxu0 0
    %249 = vmatpush1.bf16.xpose.msra.mxu0 0
    %250 = vmatprep.subr.bf16.mxu0 0
    %251 = vmatpush1.bf16.xpose.msra.mxu0 0
    %252 = vmatprep.subr.bf16.mxu0 0
    %253 = vmatpush1.bf16.xpose.msra.mxu0 0
    %254 = vmatprep.subr.bf16.mxu0 0
    %255 = vmatpush1.bf16.xpose.msra.mxu0 0
    %256 = vmatprep.subr.bf16.mxu0 0
    %257 = vmatpush1.bf16.xpose.msra.mxu0 0
    %258 = vmatprep.subr.bf16.mxu0 0
    %259 = vmatpush1.bf16.xpose.msra.mxu0 0
    %260 = vmatprep.subr.bf16.mxu0 0
    %261 = vmatpush1.bf16.xpose.msra.mxu0 0
    %262 = vmatprep.subr.bf16.mxu0 0
    %263 = vmatpush1.bf16.xpose.msra.mxu0 0
    %264 = vmatprep.subr.bf16.mxu0 0
    %265 = vmatpush1.bf16.xpose.msra.mxu0 0
    %266 = vmatprep.subr.bf16.mxu0 0
    %267 = vmatpush1.bf16.xpose.msra.mxu0 0
    %268 = vmatprep.subr.bf16.mxu0 0
    %269 = vmatpush1.bf16.xpose.msra.mxu0 0
    %270 = vmatprep.subr.bf16.mxu0 0
    %271 = vmatpush1.bf16.xpose.msra.mxu0 0
    %272 = vmatprep.mubr.bf16.mxu0 0
    %273 = vmatmul.mubr.bf16.gmra.mrb[0].mxu0 %v236
    %v274 = vpop.f32.mrb[0].mxu0
    %v275 = vadd.f32 0.0, %v274
    %v276 = vpop.f32.mrb[0].mxu0
    %v277 = vpop.f32.mrb[0].mxu0
    %v278 = vpop.f32.mrb[0].mxu0
    %279 = vdwg.mxu0
    %280 = vmatprep.subr.bf16.mxu0 0
    %281 = vmatpush1.bf16.xpose.msra.mxu0 %v239
    %282 = vmatprep.subr.bf16.mxu0 0
    %283 = vmatpush1.bf16.xpose.msra.mxu0 0
    %284 = vmatprep.subr.bf16.mxu0 0
    %285 = vmatpush1.bf16.xpose.msra.mxu0 0
    %286 = vmatprep.subr.bf16.mxu0 0
    %287 = vmatpush1.bf16.xpose.msra.mxu0 0
    %288 = vmatprep.subr.bf16.mxu0 0
    %289 = vmatpush1.bf16.xpose.msra.mxu0 0
    %290 = vmatprep.subr.bf16.mxu0 0
    %291 = vmatpush1.bf16.xpose.msra.mxu0 0
    %292 = vmatprep.subr.bf16.mxu0 0
    %293 = vmatpush1.bf16.xpose.msra.mxu0 0
    %294 = vmatprep.subr.bf16.mxu0 0
    %295 = vmatpush1.bf16.xpose.msra.mxu0 0
    %296 = vmatprep.subr.bf16.mxu0 0
    %297 = vmatpush1.bf16.xpose.msra.mxu0 0
    %298 = vmatprep.subr.bf16.mxu0 0
    %299 = vmatpush1.bf16.xpose.msra.mxu0 0
    %300 = vmatprep.subr.bf16.mxu0 0
    %301 = vmatpush1.bf16.xpose.msra.mxu0 0
    %302 = vmatprep.subr.bf16.mxu0 0
    %303 = vmatpush1.bf16.xpose.msra.mxu0 0
    %304 = vmatprep.subr.bf16.mxu0 0
    %305 = vmatpush1.bf16.xpose.msra.mxu0 0
    %306 = vmatprep.subr.bf16.mxu0 0
    %307 = vmatpush1.bf16.xpose.msra.mxu0 0
    %308 = vmatprep.subr.bf16.mxu0 0
    %309 = vmatpush1.bf16.xpose.msra.mxu0 0
    %310 = vmatprep.subr.bf16.mxu0 0
    %311 = vmatpush1.bf16.xpose.msra.mxu0 0
    %312 = vmatprep.mubr.bf16.mxu0 0
    %313 = vmatmul.mubr.bf16.gmra.mrb[0].mxu0 %v237
    %v314 = vpop.f32.mrb[0].mxu0
    %v315 = vadd.f32 0.0, %v314
    %v316 = vpop.f32.mrb[0].mxu0
    %v317 = vpop.f32.mrb[0].mxu0
    %v318 = vpop.f32.mrb[0].mxu0
    %319 = vdwg.mxu0
    %vm320 = vcmask 64512
    %v321 = vsel %vm320, %v275, -inf
    %322 = vmax.xlane.f32.xlu0 %v321
    %v323 = vpop.xlane.xlu0 %322
    %v324 = vsel %vm320, %v315, -inf
    %325 = vmax.xlane.f32.xlu0 %v324
    %v326 = vpop.xlane.xlu0 %325
    %v327 = vsub.f32 %v275, %v323
    %v328 = vsub.f32 %v315, %v326
    %v329 = vmul.f32 %v327, 1.442695
    %v330 = vpow.pop %v329
    %v331 = vmul.f32 %v328, 1.442695
    %v332 = vpow.pop %v331
    %v333 = vsel %vm320, %v330, 0.0
    %334 = vadd.xlane.f32.xlu0 %v333
    %v335 = vpop.xlane.xlu0 %334
    %v336 = vsel %vm320, %v332, 0.0
    %337 = vadd.xlane.f32.xlu0 %v336
    %v338 = vpop.xlane.xlu0 %337
    %v339 = vrcp.pop %v335
    %v340 = vmul.f32 %v330, %v339
    %v341 = vrcp.pop %v338
    %v342 = vmul.f32 %v332, %v341
    %v343 = vpack.c.bf16 %v340, %v340
    %v344 = vpack.c.bf16 %v342, %v342
    %v345 = vpack.c.bf16 %v230, %v230
    %v346 = vpack.c.bf16 %v233, %v233
    %v348 = vsel %vm320, %v343, 0
    %vm350 = vcmask 1043456
    %v352 = vsel %vm350, %v345, 0
    %354 = vmatprep.subr.bf16.mxu0 0
    %355 = vmatpush1.bf16.msra.mxu0 %v352
    %356 = vmatprep.subr.bf16.mxu0 0
    %357 = vmatpush1.bf16.msra.mxu0 0
    %358 = vmatprep.subr.bf16.mxu0 0
    %359 = vmatpush1.bf16.msra.mxu0 0
    %360 = vmatprep.subr.bf16.mxu0 0
    %361 = vmatpush1.bf16.msra.mxu0 0
    %362 = vmatprep.subr.bf16.mxu0 0
    %363 = vmatpush1.bf16.msra.mxu0 0
    %364 = vmatprep.subr.bf16.mxu0 0
    %365 = vmatpush1.bf16.msra.mxu0 0
    %366 = vmatprep.subr.bf16.mxu0 0
    %367 = vmatpush1.bf16.msra.mxu0 0
    %368 = vmatprep.subr.bf16.mxu0 0
    %369 = vmatpush1.bf16.msra.mxu0 0
    %370 = vmatprep.subr.bf16.mxu0 0
    %371 = vmatpush1.bf16.msra.mxu0 0
    %372 = vmatprep.subr.bf16.mxu0 0
    %373 = vmatpush1.bf16.msra.mxu0 0
    %374 = vmatprep.subr.bf16.mxu0 0
    %375 = vmatpush1.bf16.msra.mxu0 0
    %376 = vmatprep.subr.bf16.mxu0 0
    %377 = vmatpush1.bf16.msra.mxu0 0
    %378 = vmatprep.subr.bf16.mxu0 0
    %379 = vmatpush1.bf16.msra.mxu0 0
    %380 = vmatprep.subr.bf16.mxu0 0
    %381 = vmatpush1.bf16.msra.mxu0 0
    %382 = vmatprep.subr.bf16.mxu0 0
    %383 = vmatpush1.bf16.msra.mxu0 0
    %384 = vmatprep.subr.bf16.mxu0 0
    %385 = vmatpush1.bf16.msra.mxu0 0
    %386 = vmatprep.mubr.bf16.mxu0 0
    %387 = vmatmul.mubr.bf16.gmra.mrb[0].mxu0 %v348
    %v388 = vpop.f32.mrb[0].mxu0
    %v389 = vadd.f32 0.0, %v388
    %v390 = vpop.f32.mrb[0].mxu0
    %v391 = vpop.f32.mrb[0].mxu0
    %v392 = vpop.f32.mrb[0].mxu0
    %393 = vdwg.mxu0
    %v395 = vsel %vm320, %v344, 0
    %v398 = vsel %vm350, %v346, 0
    %400 = vmatprep.subr.bf16.mxu0 0
    %401 = vmatpush1.bf16.msra.mxu0 %v398
    %402 = vmatprep.subr.bf16.mxu0 0
    %403 = vmatpush1.bf16.msra.mxu0 0
    %404 = vmatprep.subr.bf16.mxu0 0
    %405 = vmatpush1.bf16.msra.mxu0 0
    %406 = vmatprep.subr.bf16.mxu0 0
    %407 = vmatpush1.bf16.msra.mxu0 0
    %408 = vmatprep.subr.bf16.mxu0 0
    %409 = vmatpush1.bf16.msra.mxu0 0
    %410 = vmatprep.subr.bf16.mxu0 0
    %411 = vmatpush1.bf16.msra.mxu0 0
    %412 = vmatprep.subr.bf16.mxu0 0
    %413 = vmatpush1.bf16.msra.mxu0 0
    %414 = vmatprep.subr.bf16.mxu0 0
    %415 = vmatpush1.bf16.msra.mxu0 0
    %416 = vmatprep.subr.bf16.mxu0 0
    %417 = vmatpush1.bf16.msra.mxu0 0
    %418 = vmatprep.subr.bf16.mxu0 0
    %419 = vmatpush1.bf16.msra.mxu0 0
    %420 = vmatprep.subr.bf16.mxu0 0
    %421 = vmatpush1.bf16.msra.mxu0 0
    %422 = vmatprep.subr.bf16.mxu0 0
    %423 = vmatpush1.bf16.msra.mxu0 0
    %424 = vmatprep.subr.bf16.mxu0 0
    %425 = vmatpush1.bf16.msra.mxu0 0
    %426 = vmatprep.subr.bf16.mxu0 0
    %427 = vmatpush1.bf16.msra.mxu0 0
    %428 = vmatprep.subr.bf16.mxu0 0
    %429 = vmatpush1.bf16.msra.mxu0 0
    %430 = vmatprep.subr.bf16.mxu0 0
    %431 = vmatpush1.bf16.msra.mxu0 0
    %432 = vmatprep.mubr.bf16.mxu0 0
    %433 = vmatmul.mubr.bf16.gmra.mrb[0].mxu0 %v395
    %v434 = vpop.f32.mrb[0].mxu0
    %v435 = vadd.f32 0.0, %v434
    %v436 = vpop.f32.mrb[0].mxu0
    %v437 = vpop.f32.mrb[0].mxu0
    %v438 = vpop.f32.mrb[0].mxu0
    %439 = vdwg.mxu0
    %v440 = vpack.c.bf16 %v435, %v389
    %v441 = vld [vmem:[%s4] sm:$0xf]
    %v442 = vld [vmem:[%s4 + $0x4] sm:$0xf]
    %v443 = vld [vmem:[%s4 + $0x8] sm:$0xf]
    %v444 = vld [vmem:[%s4 + $0xc] sm:$0xf]
    %v445 = vld [vmem:[%s4 + $0x10] sm:$0xf]
    %v446 = vld [vmem:[%s4 + $0x14] sm:$0xf]
    %v447 = vld [vmem:[%s4 + $0x18] sm:$0xf]
    %v448 = vld [vmem:[%s4 + $0x1c] sm:$0xf]
    %v449 = vld [vmem:[%s4 + $0x20] sm:$0xf]
    %v450 = vld [vmem:[%s4 + $0x24] sm:$0xf]
    %v451 = vld [vmem:[%s4 + $0x28] sm:$0xf]
    %v452 = vld [vmem:[%s4 + $0x2c] sm:$0xf]
    %v453 = vld [vmem:[%s4 + $0x30] sm:$0xf]
    %v454 = vld [vmem:[%s4 + $0x34] sm:$0xf]
    %v455 = vld [vmem:[%s4 + $0x38] sm:$0xf]
    %v456 = vld [vmem:[%s4 + $0x3c] sm:$0xf]
    %v457 = vld [vmem:[%s5] sm:$0x1]
    %v459 = vlaneseq
    %v460 = vshrl.u32 %v459, 7
    %v461 = vsub.s32 0, %v460
    %v462 = vrot.slane %v457, %v461
    %v480 = vunpack.c.l.b16 %v441
    %v481 = vunpack.c.l.b16 %v442
    %v482 = vunpack.c.l.b16 %v443
    %v483 = vunpack.c.l.b16 %v444
    %v484 = vunpack.c.l.b16 %v445
    %v485 = vunpack.c.l.b16 %v446
    %v486 = vunpack.c.l.b16 %v447
    %v487 = vunpack.c.l.b16 %v448
    %v488 = vunpack.c.l.b16 %v449
    %v489 = vunpack.c.l.b16 %v450
    %v490 = vunpack.c.l.b16 %v451
    %v491 = vunpack.c.l.b16 %v452
    %v492 = vunpack.c.l.b16 %v453
    %v493 = vunpack.c.l.b16 %v454
    %v494 = vunpack.c.l.b16 %v455
    %v495 = vunpack.c.l.b16 %v456
    %v496 = vpack.c.b16 %v481, %v480
    %v497 = vpack.c.b16 %v483, %v482
    %v498 = vpack.c.b16 %v485, %v484
    %v499 = vpack.c.b16 %v487, %v486
    %v500 = vpack.c.b16 %v489, %v488
    %v501 = vpack.c.b16 %v491, %v490
    %v502 = vpack.c.b16 %v493, %v492
    %v503 = vpack.c.b16 %v495, %v494
    %512 = vmatprep.subr.bf16.mxu0 0
    %513 = vmatpush1.bf16.msra.mxu0 %v496
    %514 = vmatprep.subr.bf16.mxu0 0
    %515 = vmatpush1.bf16.msra.mxu0 %v497
    %516 = vmatprep.subr.bf16.mxu0 0
    %517 = vmatpush1.bf16.msra.mxu0 %v498
    %518 = vmatprep.subr.bf16.mxu0 0
    %519 = vmatpush1.bf16.msra.mxu0 %v499
    %520 = vmatprep.subr.bf16.mxu0 0
    %521 = vmatpush1.bf16.msra.mxu0 %v500
    %522 = vmatprep.subr.bf16.mxu0 0
    %523 = vmatpush1.bf16.msra.mxu0 %v501
    %524 = vmatprep.subr.bf16.mxu0 0
    %525 = vmatpush1.bf16.msra.mxu0 %v502
    %526 = vmatprep.subr.bf16.mxu0 0
    %527 = vmatpush1.bf16.msra.mxu0 %v503
    %528 = vmatprep.subr.bf16.mxu0 0
    %529 = vmatpush1.bf16.msra.mxu0 0
    %530 = vmatprep.subr.bf16.mxu0 0
    %531 = vmatpush1.bf16.msra.mxu0 0
    %532 = vmatprep.subr.bf16.mxu0 0
    %533 = vmatpush1.bf16.msra.mxu0 0
    %534 = vmatprep.subr.bf16.mxu0 0
    %535 = vmatpush1.bf16.msra.mxu0 0
    %536 = vmatprep.subr.bf16.mxu0 0
    %537 = vmatpush1.bf16.msra.mxu0 0
    %538 = vmatprep.subr.bf16.mxu0 0
    %539 = vmatpush1.bf16.msra.mxu0 0
    %540 = vmatprep.subr.bf16.mxu0 0
    %541 = vmatpush1.bf16.msra.mxu0 0
    %542 = vmatprep.subr.bf16.mxu0 0
    %543 = vmatpush1.bf16.msra.mxu0 0
    %544 = vmatprep.mubr.bf16.mxu0 0
    %545 = vmatmul.mubr.bf16.gmra.mrb[0].mxu0 %v440
    %v546 = vpop.f32.mrb[0].mxu0
    %v547 = vadd.f32 %v462, %v546
    %v548 = vpop.f32.mrb[0].mxu0
    %v549 = vpop.f32.mrb[0].mxu0
    %v550 = vadd.f32 %v462, %v549
    %v551 = vpop.f32.mrb[0].mxu0
    %552 = vdwg.mxu0
    %v553 = vadd.f32 %v88, %v547
    %v554 = vadd.f32 %v89, %v550
    %v555 = vld [vmem:[%s6] sm:$0x1]
    %v556 = vld [vmem:[%s7] sm:$0x1]
    %v557 = vsel %vm148, %v553, 0.0
    %558 = vadd.xlane.f32.xlu0 %v557
    %v559 = vpop.xlane.xlu0 %558
    %v560 = vsel %vm148, %v554, 0.0
    %561 = vadd.xlane.f32.xlu0 %v560
    %v562 = vpop.xlane.xlu0 %561
    %v563 = vrcp.pop 32.0
    %v564 = vmul.f32 %v559, %v563
    %v565 = vmul.f32 %v562, %v563
    %v566 = vsub.f32 %v553, %v564
    %v567 = vsub.f32 %v554, %v565
    %v568 = vmul.f32 %v566, %v566
    %v569 = vmul.f32 %v567, %v567
    %v570 = vsel %vm148, %v568, 0.0
    %571 = vadd.xlane.f32.xlu0 %v570
    %v572 = vpop.xlane.xlu0 %571
    %v573 = vsel %vm148, %v569, 0.0
    %574 = vadd.xlane.f32.xlu0 %v573
    %v575 = vpop.xlane.xlu0 %574
    %v576 = vmul.f32 %v572, %v563
    %v577 = vmul.f32 %v575, %v563
    %v578 = vadd.f32 %v576, 1e-05
    %v579 = vadd.f32 %v577, 1e-05
    %v580 = vrsqrt.pop %v578
    %v581 = vrsqrt.pop %v579
    %v582 = vmul.f32 %v566, %v580
    %v583 = vmul.f32 %v567, %v581
    %v585 = vlaneseq
    %v586 = vshrl.u32 %v585, 7
    %v587 = vsub.s32 0, %v586
    %v588 = vrot.slane %v555, %v587
    %v590 = vmul.f32 %v582, %v588
    %v591 = vmul.f32 %v583, %v588
    %v593 = vlaneseq
    %v594 = vshrl.u32 %v593, 7
    %v595 = vsub.s32 0, %v594
    %v596 = vrot.slane %v556, %v595
    %v598 = vadd.f32 %v590, %v596
    %v599 = vadd.f32 %v591, %v596
    %v600 = vpack.c.bf16 %v599, %v598
    %v601 = vld [vmem:[%s8] sm:$0xf]
    %v602 = vld [vmem:[%s8 + $0x4] sm:$0xf]
    %v603 = vld [vmem:[%s8 + $0x8] sm:$0xf]
    %v604 = vld [vmem:[%s8 + $0xc] sm:$0xf]
    %v605 = vld [vmem:[%s9] sm:$0x1]
    %v607 = vlaneseq
    %v608 = vshrl.u32 %v607, 7
    %v609 = vsub.s32 0, %v608
    %v610 = vrot.slane %v605, %v609
    %v616 = vunpack.c.l.b16 %v601
    %v617 = vunpack.c.l.b16 %v602
    %v618 = vunpack.c.l.b16 %v603
    %v619 = vunpack.c.l.b16 %v604
    %v620 = vpack.c.b16 %v617, %v616
    %v621 = vpack.c.b16 %v619, %v618
    %v625 = vsel %vm148, %v600, 0
    %627 = vmatprep.subr.bf16.mxu0 0
    %628 = vmatpush1.bf16.msra.mxu0 %v620
    %629 = vmatprep.subr.bf16.mxu0 0
    %630 = vmatpush1.bf16.msra.mxu0 %v621
    %631 = vmatprep.subr.bf16.mxu0 0
    %632 = vmatpush1.bf16.msra.mxu0 0
    %633 = vmatprep.subr.bf16.mxu0 0
    %634 = vmatpush1.bf16.msra.mxu0 0
    %635 = vmatprep.subr.bf16.mxu0 0
    %636 = vmatpush1.bf16.msra.mxu0 0
    %637 = vmatprep.subr.bf16.mxu0 0
    %638 = vmatpush1.bf16.msra.mxu0 0
    %639 = vmatprep.subr.bf16.mxu0 0
    %640 = vmatpush1.bf16.msra.mxu0 0
    %641 = vmatprep.subr.bf16.mxu0 0
    %642 = vmatpush1.bf16.msra.mxu0 0
    %643 = vmatprep.subr.bf16.mxu0 0
    %644 = vmatpush1.bf16.msra.mxu0 0
    %645 = vmatprep.subr.bf16.mxu0 0
    %646 = vmatpush1.bf16.msra.mxu0 0
    %647 = vmatprep.subr.bf16.mxu0 0
    %648 = vmatpush1.bf16.msra.mxu0 0
    %649 = vmatprep.subr.bf16.mxu0 0
    %650 = vmatpush1.bf16.msra.mxu0 0
    %651 = vmatprep.subr.bf16.mxu0 0
    %652 = vmatpush1.bf16.msra.mxu0 0
    %653 = vmatprep.subr.bf16.mxu0 0
    %654 = vmatpush1.bf16.msra.mxu0 0
    %655 = vmatprep.subr.bf16.mxu0 0
    %656 = vmatpush1.bf16.msra.mxu0 0
    %657 = vmatprep.subr.bf16.mxu0 0
    %658 = vmatpush1.bf16.msra.mxu0 0
    %659 = vmatprep.mubr.bf16.mxu0 0
    %660 = vmatmul.mubr.bf16.gmra.mrb[0].mxu0 %v625
    %v661 = vpop.f32.mrb[0].mxu0
    %v662 = vadd.f32 %v610, %v661
    %v663 = vpop.f32.mrb[0].mxu0
    %v664 = vpop.f32.mrb[0].mxu0
    %v665 = vadd.f32 %v610, %v664
    %v666 = vpop.f32.mrb[0].mxu0
    %667 = vdwg.mxu0
    %v668 = vmax.f32 %v662, 0.0
    %v669 = vmax.f32 %v665, 0.0
    %v670 = vpack.c.bf16 %v669, %v668
    %v671 = vld [vmem:[%s10] sm:$0xf]
    %v672 = vld [vmem:[%s10 + $0x4] sm:$0xf]
    %v673 = vld [vmem:[%s10 + $0x8] sm:$0xf]
    %v674 = vld [vmem:[%s10 + $0xc] sm:$0xf]
    %v675 = vld [vmem:[%s10 + $0x10] sm:$0xf]
    %v676 = vld [vmem:[%s10 + $0x14] sm:$0xf]
    %v677 = vld [vmem:[%s10 + $0x18] sm:$0xf]
    %v678 = vld [vmem:[%s10 + $0x1c] sm:$0xf]
    %v679 = vld [vmem:[%s10 + $0x20] sm:$0xf]
    %v680 = vld [vmem:[%s10 + $0x24] sm:$0xf]
    %v681 = vld [vmem:[%s10 + $0x28] sm:$0xf]
    %v682 = vld [vmem:[%s10 + $0x2c] sm:$0xf]
    %v683 = vld [vmem:[%s10 + $0x30] sm:$0xf]
    %v684 = vld [vmem:[%s10 + $0x34] sm:$0xf]
    %v685 = vld [vmem:[%s10 + $0x38] sm:$0xf]
    %v686 = vld [vmem:[%s10 + $0x3c] sm:$0xf]
    %v687 = vld [vmem:[%s11] sm:$0x1]
    %v689 = vlaneseq
    %v690 = vshrl.u32 %v689, 7
    %v691 = vsub.s32 0, %v690
    %v692 = vrot.slane %v687, %v691
    %v710 = vunpack.c.l.b16 %v671
    %v711 = vunpack.c.l.b16 %v672
    %v712 = vunpack.c.l.b16 %v673
    %v713 = vunpack.c.l.b16 %v674
    %v714 = vunpack.c.l.b16 %v675
    %v715 = vunpack.c.l.b16 %v676
    %v716 = vunpack.c.l.b16 %v677
    %v717 = vunpack.c.l.b16 %v678
    %v718 = vunpack.c.l.b16 %v679
    %v719 = vunpack.c.l.b16 %v680
    %v720 = vunpack.c.l.b16 %v681
    %v721 = vunpack.c.l.b16 %v682
    %v722 = vunpack.c.l.b16 %v683
    %v723 = vunpack.c.l.b16 %v684
    %v724 = vunpack.c.l.b16 %v685
    %v725 = vunpack.c.l.b16 %v686
    %v726 = vpack.c.b16 %v711, %v710
    %v727 = vpack.c.b16 %v713, %v712
    %v728 = vpack.c.b16 %v715, %v714
    %v729 = vpack.c.b16 %v717, %v716
    %v730 = vpack.c.b16 %v719, %v718
    %v731 = vpack.c.b16 %v721, %v720
    %v732 = vpack.c.b16 %v723, %v722
    %v733 = vpack.c.b16 %v725, %v724
    %742 = vmatprep.subr.bf16.mxu0 0
    %743 = vmatpush1.bf16.msra.mxu0 %v726
    %744 = vmatprep.subr.bf16.mxu0 0
    %745 = vmatpush1.bf16.msra.mxu0 %v727
    %746 = vmatprep.subr.bf16.mxu0 0
    %747 = vmatpush1.bf16.msra.mxu0 %v728
    %748 = vmatprep.subr.bf16.mxu0 0
    %749 = vmatpush1.bf16.msra.mxu0 %v729
    %750 = vmatprep.subr.bf16.mxu0 0
    %751 = vmatpush1.bf16.msra.mxu0 %v730
    %752 = vmatprep.subr.bf16.mxu0 0
    %753 = vmatpush1.bf16.msra.mxu0 %v731
    %754 = vmatprep.subr.bf16.mxu0 0
    %755 = vmatpush1.bf16.msra.mxu0 %v732
    %756 = vmatprep.subr.bf16.mxu0 0
    %757 = vmatpush1.bf16.msra.mxu0 %v733
    %758 = vmatprep.subr.bf16.mxu0 0
    %759 = vmatpush1.bf16.msra.mxu0 0
    %760 = vmatprep.subr.bf16.mxu0 0
    %761 = vmatpush1.bf16.msra.mxu0 0
    %762 = vmatprep.subr.bf16.mxu0 0
    %763 = vmatpush1.bf16.msra.mxu0 0
    %764 = vmatprep.subr.bf16.mxu0 0
    %765 = vmatpush1.bf16.msra.mxu0 0
    %766 = vmatprep.subr.bf16.mxu0 0
    %767 = vmatpush1.bf16.msra.mxu0 0
    %768 = vmatprep.subr.bf16.mxu0 0
    %769 = vmatpush1.bf16.msra.mxu0 0
    %770 = vmatprep.subr.bf16.mxu0 0
    %771 = vmatpush1.bf16.msra.mxu0 0
    %772 = vmatprep.subr.bf16.mxu0 0
    %773 = vmatpush1.bf16.msra.mxu0 0
    %774 = vmatprep.mubr.bf16.mxu0 0
    %775 = vmatmul.mubr.bf16.gmra.mrb[0].mxu0 %v670
    %v776 = vpop.f32.mrb[0].mxu0
    %v777 = vadd.f32 %v692, %v776
    %v778 = vpop.f32.mrb[0].mxu0
    %v779 = vpop.f32.mrb[0].mxu0
    %v780 = vadd.f32 %v692, %v779
    %v781 = vpop.f32.mrb[0].mxu0
    %782 = vdwg.mxu0
    %v783 = vadd.f32 %v598, %v777
    %v784 = vadd.f32 %v599, %v780
    %v785 = vld [vmem:[%s12] sm:$0x1]
    %v786 = vld [vmem:[%s13] sm:$0x1]
    %v787 = vsel %vm148, %v783, 0.0
    %788 = vadd.xlane.f32.xlu0 %v787
    %v789 = vpop.xlane.xlu0 %788
    %v790 = vsel %vm148, %v784, 0.0
    %791 = vadd.xlane.f32.xlu0 %v790
    %v792 = vpop.xlane.xlu0 %791
    %v793 = vmul.f32 %v789, %v563
    %v794 = vmul.f32 %v792, %v563
    %v795 = vsub.f32 %v783, %v793
    %v796 = vsub.f32 %v784, %v794
    %v797 = vmul.f32 %v795, %v795
    %v798 = vmul.f32 %v796, %v796
    %v799 = vsel %vm148, %v797, 0.0
    %800 = vadd.xlane.f32.xlu0 %v799
    %v801 = vpop.xlane.xlu0 %800
    %v802 = vsel %vm148, %v798, 0.0
    %803 = vadd.xlane.f32.xlu0 %v802
    %v804 = vpop.xlane.xlu0 %803
    %v805 = vmul.f32 %v801, %v563
    %v806 = vmul.f32 %v804, %v563
    %v807 = vadd.f32 %v805, 1e-05
    %v808 = vadd.f32 %v806, 1e-05
    %v809 = vrsqrt.pop %v807
    %v810 = vrsqrt.pop %v808
    %v811 = vmul.f32 %v795, %v809
    %v812 = vmul.f32 %v796, %v810
    %v814 = vlaneseq
    %v815 = vshrl.u32 %v814, 7
    %v816 = vsub.s32 0, %v815
    %v817 = vrot.slane %v785, %v816
    %v819 = vmul.f32 %v811, %v817
    %v820 = vmul.f32 %v812, %v817
    %v822 = vlaneseq
    %v823 = vshrl.u32 %v822, 7
    %v824 = vsub.s32 0, %v823
    %v825 = vrot.slane %v786, %v824
    %v827 = vadd.f32 %v819, %v825
    %v828 = vadd.f32 %v820, %v825
    %v829 = vsel %vm148, %v827, 0.0
    %v830 = vrot.slane %v829, 4
    %v831 = vadd.f32 %v829, %v830
    %v832 = vrot.slane %v831, 2
    %v833 = vadd.f32 %v831, %v832
    %v834 = vrot.slane %v833, 1
    %v835 = vadd.f32 %v833, %v834
    %v836 = vsel %vm148, %v828, 0.0
    %v837 = vrot.slane %v836, 4
    %v838 = vadd.f32 %v836, %v837
    %v839 = vrot.slane %v838, 2
    %v840 = vadd.f32 %v838, %v839
    %v841 = vrot.slane %v840, 1
    %v842 = vadd.f32 %v840, %v841
    %v843 = vrcp.pop 8.0
    %v844 = vmul.f32 %v835, %v843
    %v845 = vmul.f32 %v842, %v843
    %v846 = vpack.c.bf16 %v844, %v844
    %v847 = vpack.c.bf16 %v845, %v845
    %v848 = vld [vmem:[%s14] sm:$0xf]
    %v849 = vld [vmem:[%s14 + $0x4] sm:$0xf]
    %v850 = vld [vmem:[%s14 + $0x8] sm:$0xf]
    %v851 = vld [vmem:[%s14 + $0xc] sm:$0xf]
    %v852 = vld [vmem:[%s15] sm:$0x1]
    %v854 = vlaneseq
    %v855 = vshrl.u32 %v854, 7
    %v856 = vsub.s32 0, %v855
    %v857 = vrot.slane %v852, %v856
    %v861 = vunpack.c.l.b16 %v846
    %v862 = vunpack.c.l.b16 %v847
    %vm863 = vcmask 1041409
    %v864 = vsel %vm863, %v862, %v861
    %v865 = vpack.c.b16 %v864, %v864
    %v870 = vunpack.c.l.b16 %v848
    %v871 = vunpack.c.l.b16 %v849
    %v872 = vunpack.c.l.b16 %v850
    %v873 = vunpack.c.l.b16 %v851
    %v874 = vpack.c.b16 %v871, %v870
    %v875 = vpack.c.b16 %v873, %v872
    %v879 = vsel %vm148, %v865, 0
    %881 = vmatprep.subr.bf16.mxu0 0
    %882 = vmatpush1.bf16.msra.mxu0 %v874
    %883 = vmatprep.subr.bf16.mxu0 0
    %884 = vmatpush1.bf16.msra.mxu0 %v875
    %885 = vmatprep.subr.bf16.mxu0 0
    %886 = vmatpush1.bf16.msra.mxu0 0
    %887 = vmatprep.subr.bf16.mxu0 0
    %888 = vmatpush1.bf16.msra.mxu0 0
    %889 = vmatprep.subr.bf16.mxu0 0
    %890 = vmatpush1.bf16.msra.mxu0 0
    %891 = vmatprep.subr.bf16.mxu0 0
    %892 = vmatpush1.bf16.msra.mxu0 0
    %893 = vmatprep.subr.bf16.mxu0 0
    %894 = vmatpush1.bf16.msra.mxu0 0
    %895 = vmatprep.subr.bf16.mxu0 0
    %896 = vmatpush1.bf16.msra.mxu0 0
    %897 = vmatprep.subr.bf16.mxu0 0
    %898 = vmatpush1.bf16.msra.mxu0 0
    %899 = vmatprep.subr.bf16.mxu0 0
    %900 = vmatpush1.bf16.msra.mxu0 0
    %901 = vmatprep.subr.bf16.mxu0 0
    %902 = vmatpush1.bf16.msra.mxu0 0
    %903 = vmatprep.subr.bf16.mxu0 0
    %904 = vmatpush1.bf16.msra.mxu0 0
    %905 = vmatprep.subr.bf16.mxu0 0
    %906 = vmatpush1.bf16.msra.mxu0 0
    %907 = vmatprep.subr.bf16.mxu0 0
    %908 = vmatpush1.bf16.msra.mxu0 0
    %909 = vmatprep.subr.bf16.mxu0 0
    %910 = vmatpush1.bf16.msra.mxu0 0
    %911 = vmatprep.subr.bf16.mxu0 0
    %912 = vmatpush1.bf16.msra.mxu0 0
    %913 = vmatprep.mubr.bf16.mxu0 0
    %914 = vmatmul.mubr.bf16.gmra.mrb[0].mxu0 %v879
    %v915 = vpop.f32.mrb[0].mxu0
    %v916 = vadd.f32 %v857, %v915
    %v917 = vpop.f32.mrb[0].mxu0
    %v918 = vpop.f32.mrb[0].mxu0
    %v919 = vpop.f32.mrb[0].mxu0
    %920 = vdwg.mxu0
    %v921 = vmax.f32 %v916, 0.0
    %v922 = vpack.c.bf16 %v921, %v921
    %v923 = vld [vmem:[%s16] sm:$0xf]
    %v924 = vld [vmem:[%s16 + $0x4] sm:$0xf]
    %v925 = vld [vmem:[%s16 + $0x8] sm:$0xf]
    %v926 = vld [vmem:[%s16 + $0xc] sm:$0xf]
    %v927 = vld [vmem:[%s16 + $0x10] sm:$0xf]
    %v928 = vld [vmem:[%s16 + $0x14] sm:$0xf]
    %v929 = vld [vmem:[%s16 + $0x18] sm:$0xf]
    %v930 = vld [vmem:[%s16 + $0x1c] sm:$0xf]
    %v931 = vld [vmem:[%s16 + $0x20] sm:$0xf]
    %v932 = vld [vmem:[%s16 + $0x24] sm:$0xf]
    %v933 = vld [vmem:[%s16 + $0x28] sm:$0xf]
    %v934 = vld [vmem:[%s16 + $0x2c] sm:$0xf]
    %v935 = vld [vmem:[%s16 + $0x30] sm:$0xf]
    %v936 = vld [vmem:[%s16 + $0x34] sm:$0xf]
    %v937 = vld [vmem:[%s16 + $0x38] sm:$0xf]
    %v938 = vld [vmem:[%s16 + $0x3c] sm:$0xf]
    %v939 = vld [vmem:[%s17] sm:$0x1]
    %v941 = vlaneseq
    %v942 = vshrl.u32 %v941, 7
    %v943 = vsub.s32 0, %v942
    %v944 = vrot.slane %v939, %v943
    %v962 = vunpack.c.l.b16 %v923
    %v963 = vunpack.c.l.b16 %v924
    %v964 = vunpack.c.l.b16 %v925
    %v965 = vunpack.c.l.b16 %v926
    %v966 = vunpack.c.l.b16 %v927
    %v967 = vunpack.c.l.b16 %v928
    %v968 = vunpack.c.l.b16 %v929
    %v969 = vunpack.c.l.b16 %v930
    %v970 = vunpack.c.l.b16 %v931
    %v971 = vunpack.c.l.b16 %v932
    %v972 = vunpack.c.l.b16 %v933
    %v973 = vunpack.c.l.b16 %v934
    %v974 = vunpack.c.l.b16 %v935
    %v975 = vunpack.c.l.b16 %v936
    %v976 = vunpack.c.l.b16 %v937
    %v977 = vunpack.c.l.b16 %v938
    %v978 = vpack.c.b16 %v963, %v962
    %v979 = vpack.c.b16 %v965, %v964
    %v980 = vpack.c.b16 %v967, %v966
    %v981 = vpack.c.b16 %v969, %v968
    %v982 = vpack.c.b16 %v971, %v970
    %v983 = vpack.c.b16 %v973, %v972
    %v984 = vpack.c.b16 %v975, %v974
    %v985 = vpack.c.b16 %v977, %v976
    %994 = vmatprep.subr.bf16.mxu0 0
    %995 = vmatpush1.bf16.msra.mxu0 %v978
    %996 = vmatprep.subr.bf16.mxu0 0
    %997 = vmatpush1.bf16.msra.mxu0 %v979
    %998 = vmatprep.subr.bf16.mxu0 0
    %999 = vmatpush1.bf16.msra.mxu0 %v980
    %1000 = vmatprep.subr.bf16.mxu0 0
    %1001 = vmatpush1.bf16.msra.mxu0 %v981
    %1002 = vmatprep.subr.bf16.mxu0 0
    %1003 = vmatpush1.bf16.msra.mxu0 %v982
    %1004 = vmatprep.subr.bf16.mxu0 0
    %1005 = vmatpush1.bf16.msra.mxu0 %v983
    %1006 = vmatprep.subr.bf16.mxu0 0
    %1007 = vmatpush1.bf16.msra.mxu0 %v984
    %1008 = vmatprep.subr.bf16.mxu0 0
    %1009 = vmatpush1.bf16.msra.mxu0 %v985
    %1010 = vmatprep.subr.bf16.mxu0 0
    %1011 = vmatpush1.bf16.msra.mxu0 0
    %1012 = vmatprep.subr.bf16.mxu0 0
    %1013 = vmatpush1.bf16.msra.mxu0 0
    %1014 = vmatprep.subr.bf16.mxu0 0
    %1015 = vmatpush1.bf16.msra.mxu0 0
    %1016 = vmatprep.subr.bf16.mxu0 0
    %1017 = vmatpush1.bf16.msra.mxu0 0
    %1018 = vmatprep.subr.bf16.mxu0 0
    %1019 = vmatpush1.bf16.msra.mxu0 0
    %1020 = vmatprep.subr.bf16.mxu0 0
    %1021 = vmatpush1.bf16.msra.mxu0 0
    %1022 = vmatprep.subr.bf16.mxu0 0
    %1023 = vmatpush1.bf16.msra.mxu0 0
    %1024 = vmatprep.subr.bf16.mxu0 0
    %1025 = vmatpush1.bf16.msra.mxu0 0
    %1026 = vmatprep.mubr.bf16.mxu0 0
    %1027 = vmatmul.mubr.bf16.gmra.mrb[0].mxu0 %v922
    %v1028 = vpop.f32.mrb[0].mxu0
    %v1029 = vadd.f32 %v944, %v1028
    %v1030 = vpop.f32.mrb[0].mxu0
    %v1031 = vpop.f32.mrb[0].mxu0
    %v1032 = vpop.f32.mrb[0].mxu0
    %1033 = vdwg.mxu0
    %1034 = vst [vmem:[#allocation7] sm:$0x3] %v1029
    // Predicated region
    $region82: #{tpu_custom_call.1} parent=1 // pred_check
      _
    $region83: #{tpu_custom_call.1} parent=1 // pred_check_branch
      %1036 = sbr.rel (0) target = $region85
    $region84: #{tpu_custom_call.1} parent=1 // pred_region
      %s1038 = ssub.s32 32, 32
      %1039 = vsyncadd [#allocation4], %s1038
      %s1041 = sshll.u32 [#allocation7], 4
      %s1042 = int_to_ptr.vmem [resolvable:$true] %s1041
      %1044 = dma.vmem_to_hbm [thread:$0]  %s1042, 32, %s18, [#allocation4]
    $region85: #{tpu_custom_call.1} parent=1 // pred_fallthru
      _
    // Predicated region
    $region86: #{tpu_custom_call.1} parent=1 // pred_check
      _
    $region87: #{tpu_custom_call.1} parent=1 // pred_check_branch
      %1046 = sbr.rel (0) target = $region89
    $region88: #{tpu_custom_call.1} parent=1 // pred_region
      %1047 = dma.done [#allocation4], 32
    $region89: #{tpu_custom_call.1} parent=1 // pred_fallthru
      _
    %1048 = vsyncpa [#allocation3], 1
    %1049 = vsyncpa [#allocation6], 1
    %1050 = vsyncpa [#allocation4], 1

// kernel: tpu_custom_call.1
$region0: #{tpu_custom_call.1}
  #allocation0 [shape = 'u32[]', space=smem, size = 0x4, offset = 0x4, fixed_abs, tag = 'smem constant byte address 0x4 - core index']
  #allocation1 [shape = 'u32[144,128]{1,0:T(1,128)}', space=vmem, size = 0x12000, scoped, tag = 'internal scratch']
  %s0 = inlined_call_operand.vmem [shape: f32[2,8,32], index: 0, kind: input, shape index: {}]
  %s1 = inlined_call_operand.hbm [shape: f32[1,8,32], index: 1, kind: input, shape index: {}]
  %s2 = inlined_call_operand.vmem [shape: bf16[32,384], index: 2, kind: input, shape index: {}]
  %s3 = inlined_call_operand.hbm [shape: f32[1,384], index: 3, kind: input, shape index: {}]
  %s4 = inlined_call_operand.vmem [shape: bf16[128,32], index: 4, kind: input, shape index: {}]
  %s5 = inlined_call_operand.vmem [shape: f32[1,32], index: 5, kind: input, shape index: {}]
  %s6 = inlined_call_operand.vmem [shape: f32[1,32], index: 6, kind: input, shape index: {}]
  %s7 = inlined_call_operand.vmem [shape: f32[1,32], index: 7, kind: input, shape index: {}]
  %s8 = inlined_call_operand.vmem [shape: bf16[32,128], index: 8, kind: input, shape index: {}]
  %s9 = inlined_call_operand.vmem [shape: f32[1,128], index: 9, kind: input, shape index: {}]
  %s10 = inlined_call_operand.vmem [shape: bf16[128,32], index: 10, kind: input, shape index: {}]
  %s11 = inlined_call_operand.vmem [shape: f32[1,32], index: 11, kind: input, shape index: {}]
  %s12 = inlined_call_operand.vmem [shape: f32[1,32], index: 12, kind: input, shape index: {}]
  %s13 = inlined_call_operand.vmem [shape: f32[1,32], index: 13, kind: input, shape index: {}]
  %s14 = inlined_call_operand.vmem [shape: bf16[32,128], index: 14, kind: input, shape index: {}]
  %s15 = inlined_call_operand.vmem [shape: f32[1,128], index: 15, kind: input, shape index: {}]
  %s16 = inlined_call_operand.vmem [shape: bf16[128,128], index: 16, kind: input, shape index: {}]
  %s17 = inlined_call_operand.vmem [shape: f32[1,128], index: 17, kind: input, shape index: {}]
  %s18 = inlined_call_operand.hbm [shape: f32[2,128], index: 18, kind: output, shape index: {}]
  %s19 = sld [smem:[#allocation0]]
  $region90: #{tpu_custom_call.1} parent=0
    _
  %s21 = ssub.s32 1, %s19
  %s22 = scalar_select 0, %s21, %s19
  $region1: #{tpu_custom_call.1} parent=0
    #allocation2 [shape = 'u8[4096]{0}', space=vmem, size = 0x1000, scoped, tag = 'input window, operand 1, single buffered']
    #allocation3 [shape = 's32[1]{0}', space=sflag, size = 0x4, scoped, tag = 'scoped memory for tpu_custom_call.1']
    #allocation4 [shape = 's32[1]{0}', space=sflag, size = 0x4, scoped, tag = 'scoped memory for tpu_custom_call.1']
    #allocation5 [shape = 'u8[1536]{0}', space=vmem, size = 0x800, scoped, tag = 'input window, operand 3, single buffered']
    #allocation6 [shape = 's32[1]{0}', space=sflag, size = 0x4, scoped, tag = 'scoped memory for tpu_custom_call.1']
    #allocation7 [shape = 'u8[1024]{0}', space=vmem, size = 0x400, scoped, tag = 'output window, operand 0, single buffered']
    %23 = vsyncpa [#allocation3], 0
    %24 = vsyncpa [#allocation6], 0
    %25 = vsyncpa [#allocation4], 0
    // Predicated region
    $region2: #{tpu_custom_call.1} parent=1 // pred_check
      _
    $region3: #{tpu_custom_call.1} parent=1 // pred_check_branch
      %27 = sbr.rel (0) target = $region5
    $region4: #{tpu_custom_call.1} parent=1 // pred_region
      _
    $region5: #{tpu_custom_call.1} parent=1 // pred_fallthru
      _
    // Predicated region
    $region6: #{tpu_custom_call.1} parent=1 // pred_check
      _
    $region7: #{tpu_custom_call.1} parent=1 // pred_check_branch
      %29 = sbr.rel (0) target = $region9
    $region8: #{tpu_custom_call.1} parent=1 // pred_region
      %s31 = ssub.s32 128, 128
      %32 = vsyncadd [#allocation3], %s31
      %s34 = sshll.u32 [#allocation2], 4
      %s35 = int_to_ptr.vmem [resolvable:$true] %s34
      %37 = dma.hbm_to_vmem [thread:$0]  %s1, 128, %s35, [#allocation3]
    $region9: #{tpu_custom_call.1} parent=1 // pred_fallthru
      _
    // Predicated region
    $region10: #{tpu_custom_call.1} parent=1 // pred_check
      _
    $region11: #{tpu_custom_call.1} parent=1 // pred_check_branch
      %39 = sbr.rel (0) target = $region13
    $region12: #{tpu_custom_call.1} parent=1 // pred_region
      _
    $region13: #{tpu_custom_call.1} parent=1 // pred_fallthru
      _
    // Predicated region
    $region14: #{tpu_custom_call.1} parent=1 // pred_check
      _
    $region15: #{tpu_custom_call.1} parent=1 // pred_check_branch
      %41 = sbr.rel (0) target = $region17
    $region16: #{tpu_custom_call.1} parent=1 // pred_region
      %s43 = ssub.s32 48, 48
      %44 = vsyncadd [#allocation6], %s43
      %s46 = sshll.u32 [#allocation5], 4
      %s47 = int_to_ptr.vmem [resolvable:$true] %s46
      %49 = dma.hbm_to_vmem [thread:$0]  %s3, 48, %s47, [#allocation6]
    $region17: #{tpu_custom_call.1} parent=1 // pred_fallthru
      _
    // Predicated region
    $region18: #{tpu_custom_call.1} parent=1 // pred_check
      _
    $region19: #{tpu_custom_call.1} parent=1 // pred_check_branch
      %51 = sbr.rel (0) target = $region21
    $region20: #{tpu_custom_call.1} parent=1 // pred_region
      _
    $region21: #{tpu_custom_call.1} parent=1 // pred_fallthru
      _
    // Predicated region
    $region22: #{tpu_custom_call.1} parent=1 // pred_check
      _
    $region23: #{tpu_custom_call.1} parent=1 // pred_check_branch
      %53 = sbr.rel (0) target = $region25
    $region24: #{tpu_custom_call.1} parent=1 // pred_region
      _
    $region25: #{tpu_custom_call.1} parent=1 // pred_fallthru
      _
    // Predicated region
    $region26: #{tpu_custom_call.1} parent=1 // pred_check
      _
    $region27: #{tpu_custom_call.1} parent=1 // pred_check_branch
      %55 = sbr.rel (0) target = $region29
    $region28: #{tpu_custom_call.1} parent=1 // pred_region
      _
    $region29: #{tpu_custom_call.1} parent=1 // pred_fallthru
      _
    // Predicated region
    $region30: #{tpu_custom_call.1} parent=1 // pred_check
      _
    $region31: #{tpu_custom_call.1} parent=1 // pred_check_branch
      %57 = sbr.rel (0) target = $region33
    $region32: #{tpu_custom_call.1} parent=1 // pred_region
      _
    $region33: #{tpu_custom_call.1} parent=1 // pred_fallthru
      _
    // Predicated region
    $region34: #{tpu_custom_call.1} parent=1 // pred_check
      _
    $region35: #{tpu_custom_call.1} parent=1 // pred_check_branch
      %59 = sbr.rel (0) target = $region37
    $region36: #{tpu_custom_call.1} parent=1 // pred_region
      _
    $region37: #{tpu_custom_call.1} parent=1 // pred_fallthru
      _
    // Predicated region
    $region38: #{tpu_custom_call.1} parent=1 // pred_check
      _
    $region39: #{tpu_custom_call.1} parent=1 // pred_check_branch
      %61 = sbr.rel (0) target = $region41
    $region40: #{tpu_custom_call.1} parent=1 // pred_region
      _
    $region41: #{tpu_custom_call.1} parent=1 // pred_fallthru
      _
    // Predicated region
    $region42: #{tpu_custom_call.1} parent=1 // pred_check
      _
    $region43: #{tpu_custom_call.1} parent=1 // pred_check_branch
      %63 = sbr.rel (0) target = $region45
    $region44: #{tpu_custom_call.1} parent=1 // pred_region
      _
    $region45: #{tpu_custom_call.1} parent=1 // pred_fallthru
      _
    // Predicated region
    $region46: #{tpu_custom_call.1} parent=1 // pred_check
      _
    $region47: #{tpu_custom_call.1} parent=1 // pred_check_branch
      %65 = sbr.rel (0) target = $region49
    $region48: #{tpu_custom_call.1} parent=1 // pred_region
      _
    $region49: #{tpu_custom_call.1} parent=1 // pred_fallthru
      _
    // Predicated region
    $region50: #{tpu_custom_call.1} parent=1 // pred_check
      _
    $region51: #{tpu_custom_call.1} parent=1 // pred_check_branch
      %67 = sbr.rel (0) target = $region53
    $region52: #{tpu_custom_call.1} parent=1 // pred_region
      _
    $region53: #{tpu_custom_call.1} parent=1 // pred_fallthru
      _
    // Predicated region
    $region54: #{tpu_custom_call.1} parent=1 // pred_check
      _
    $region55: #{tpu_custom_call.1} parent=1 // pred_check_branch
      %69 = sbr.rel (0) target = $region57
    $region56: #{tpu_custom_call.1} parent=1 // pred_region
      _
    $region57: #{tpu_custom_call.1} parent=1 // pred_fallthru
      _
    // Predicated region
    $region58: #{tpu_custom_call.1} parent=1 // pred_check
      _
    $region59: #{tpu_custom_call.1} parent=1 // pred_check_branch
      %71 = sbr.rel (0) target = $region61
    $region60: #{tpu_custom_call.1} parent=1 // pred_region
      _
    $region61: #{tpu_custom_call.1} parent=1 // pred_fallthru
      _
    // Predicated region
    $region62: #{tpu_custom_call.1} parent=1 // pred_check
      _
    $region63: #{tpu_custom_call.1} parent=1 // pred_check_branch
      %73 = sbr.rel (0) target = $region65
    $region64: #{tpu_custom_call.1} parent=1 // pred_region
      _
    $region65: #{tpu_custom_call.1} parent=1 // pred_fallthru
      _
    // Predicated region
    $region66: #{tpu_custom_call.1} parent=1 // pred_check
      _
    $region67: #{tpu_custom_call.1} parent=1 // pred_check_branch
      %75 = sbr.rel (0) target = $region69
    $region68: #{tpu_custom_call.1} parent=1 // pred_region
      _
    $region69: #{tpu_custom_call.1} parent=1 // pred_fallthru
      _
    // Predicated region
    $region70: #{tpu_custom_call.1} parent=1 // pred_check
      _
    $region71: #{tpu_custom_call.1} parent=1 // pred_check_branch
      %77 = sbr.rel (0) target = $region73
    $region72: #{tpu_custom_call.1} parent=1 // pred_region
      _
    $region73: #{tpu_custom_call.1} parent=1 // pred_fallthru
      _
    // Predicated region
    $region74: #{tpu_custom_call.1} parent=1 // pred_check
      _
    $region75: #{tpu_custom_call.1} parent=1 // pred_check_branch
      %79 = sbr.rel (0) target = $region77
    $region76: #{tpu_custom_call.1} parent=1 // pred_region
      %80 = dma.done [#allocation3], 128
    $region77: #{tpu_custom_call.1} parent=1 // pred_fallthru
      _
    // Predicated region
    $region78: #{tpu_custom_call.1} parent=1 // pred_check
      _
    $region79: #{tpu_custom_call.1} parent=1 // pred_check_branch
      %82 = sbr.rel (0) target = $region81
    $region80: #{tpu_custom_call.1} parent=1 // pred_region
      %83 = dma.done [#allocation6], 48
    $region81: #{tpu_custom_call.1} parent=1 // pred_fallthru
      _
    %v85 = vld [vmem:[%s0] sm:$0xff]
    %v86 = vld [vmem:[%s0 + $0x8] sm:$0xff]
    %v87 = vld [vmem:[#allocation2] sm:$0xff]
    %v88 = vadd.f32 %v85, %v87
    %v89 = vadd.f32 %v86, %v87
    %v90 = vpack.c.bf16 %v89, %v88
    %v91 = vld [vmem:[%s2] sm:$0xff]
    %v92 = vld [vmem:[%s2 + $0x8] sm:$0xf]
    %v93 = vld [vmem:[%s2 + $0xc] sm:$0xff]
    %v94 = vld [vmem:[%s2 + $0x14] sm:$0xf]
    %v95 = vld [vmem:[%s2 + $0x18] sm:$0xff]
    %v96 = vld [vmem:[%s2 + $0x20] sm:$0xf]
    %v97 = vld [vmem:[%s2 + $0x24] sm:$0xff]
    %v98 = vld [vmem:[%s2 + $0x2c] sm:$0xf]
    %v99 = vld [vmem:[#allocation5] sm:$0x7]
    %v101 = vlaneseq
    %v102 = vshrl.u32 %v101, 7
    %v103 = vsub.s32 0, %v102
    %v104 = vrot.slane %v99, %v103
    %v105 = vlaneseq
    %v106 = vshrl.u32 %v105, 7
    %v107 = vsub.s32 1, %v106
    %v108 = vrot.slane %v99, %v107
    %v109 = vlaneseq
    %v110 = vshrl.u32 %v109, 7
    %v111 = vsub.s32 2, %v110
    %v112 = vrot.slane %v99, %v111
    %v124 = vunpack.c.l.b16 %v91
    %v125 = vunpack.c.h.b16 %v91
    %v126 = vunpack.c.l.b16 %v92
    %v127 = vunpack.c.l.b16 %v93
    %v128 = vunpack.c.h.b16 %v93
    %v129 = vunpack.c.l.b16 %v94
    %v130 = vunpack.c.l.b16 %v95
    %v131 = vunpack.c.h.b16 %v95
    %v132 = vunpack.c.l.b16 %v96
    %v133 = vunpack.c.l.b16 %v97
    %v134 = vunpack.c.h.b16 %v97
    %v135 = vunpack.c.l.b16 %v98
    %v136 = vpack.c.b16 %v127, %v124
    %v137 = vpack.c.b16 %v128, %v125
    %v138 = vpack.c.b16 %v129, %v126
    %v139 = vpack.c.b16 %v133, %v130
    %v140 = vpack.c.b16 %v134, %v131
    %v141 = vpack.c.b16 %v135, %v132
    %vm148 = vcmask 261120
    %v150 = vsel %vm148, %v90, 0
    %152 = vmatprep.subr.bf16.mxu0 %v137
    %153 = vmatpush1.bf16.msra.mxu0 %v136
    %154 = vmatprep.subr.bf16.mxu0 %v140
    %155 = vmatpush1.bf16.msra.mxu0 %v139
    %156 = vmatprep.subr.bf16.mxu0 0
    %157 = vmatpush1.bf16.msra.mxu0 0
    %158 = vmatprep.subr.bf16.mxu0 0
    %159 = vmatpush1.bf16.msra.mxu0 0
    %160 = vmatprep.subr.bf16.mxu0 0
    %161 = vmatpush1.bf16.msra.mxu0 0
    %162 = vmatprep.subr.bf16.mxu0 0
    %163 = vmatpush1.bf16.msra.mxu0 0
    %164 = vmatprep.subr.bf16.mxu0 0
    %165 = vmatpush1.bf16.msra.mxu0 0
    %166 = vmatprep.subr.bf16.mxu0 0
    %167 = vmatpush1.bf16.msra.mxu0 0
    %168 = vmatprep.subr.bf16.mxu0 0
    %169 = vmatpush1.bf16.msra.mxu0 0
    %170 = vmatprep.subr.bf16.mxu0 0
    %171 = vmatpush1.bf16.msra.mxu0 0
    %172 = vmatprep.subr.bf16.mxu0 0
    %173 = vmatpush1.bf16.msra.mxu0 0
    %174 = vmatprep.subr.bf16.mxu0 0
    %175 = vmatpush1.bf16.msra.mxu0 0
    %176 = vmatprep.subr.bf16.mxu0 0
    %177 = vmatpush1.bf16.msra.mxu0 0
    %178 = vmatprep.subr.bf16.mxu0 0
    %179 = vmatpush1.bf16.msra.mxu0 0
    %180 = vmatprep.subr.bf16.mxu0 0
    %181 = vmatpush1.bf16.msra.mxu0 0
    %182 = vmatprep.subr.bf16.mxu0 0
    %183 = vmatpush1.bf16.msra.mxu0 0
    %184 = vmatprep.mubr.bf16.mxu0 0
    %185 = vmatmul.mubr.bf16.gmra.mrb[0].mxu0 %v150
    %v186 = vpop.f32.mrb[0].mxu0
    %v187 = vadd.f32 %v104, %v186
    %v188 = vpop.f32.mrb[0].mxu0
    %v189 = vadd.f32 %v108, %v188
    %v190 = vpop.f32.mrb[0].mxu0
    %v191 = vadd.f32 %v104, %v190
    %v192 = vpop.f32.mrb[0].mxu0
    %v193 = vadd.f32 %v108, %v192
    %194 = vdwg.mxu0
    %195 = vmatprep.subr.bf16.mxu0 0
    %196 = vmatpush1.bf16.msra.mxu0 %v138
    %197 = vmatprep.subr.bf16.mxu0 0
    %198 = vmatpush1.bf16.msra.mxu0 %v141
    %199 = vmatprep.subr.bf16.mxu0 0
    %200 = vmatpush1.bf16.msra.mxu0 0
    %201 = vmatprep.subr.bf16.mxu0 0
    %202 = vmatpush1.bf16.msra.mxu0 0
    %203 = vmatprep.subr.bf16.mxu0 0
    %204 = vmatpush1.bf16.msra.mxu0 0
    %205 = vmatprep.subr.bf16.mxu0 0
    %206 = vmatpush1.bf16.msra.mxu0 0
    %207 = vmatprep.subr.bf16.mxu0 0
    %208 = vmatpush1.bf16.msra.mxu0 0
    %209 = vmatprep.subr.bf16.mxu0 0
    %210 = vmatpush1.bf16.msra.mxu0 0
    %211 = vmatprep.subr.bf16.mxu0 0
    %212 = vmatpush1.bf16.msra.mxu0 0
    %213 = vmatprep.subr.bf16.mxu0 0
    %214 = vmatpush1.bf16.msra.mxu0 0
    %215 = vmatprep.subr.bf16.mxu0 0
    %216 = vmatpush1.bf16.msra.mxu0 0
    %217 = vmatprep.subr.bf16.mxu0 0
    %218 = vmatpush1.bf16.msra.mxu0 0
    %219 = vmatprep.subr.bf16.mxu0 0
    %220 = vmatpush1.bf16.msra.mxu0 0
    %221 = vmatprep.subr.bf16.mxu0 0
    %222 = vmatpush1.bf16.msra.mxu0 0
    %223 = vmatprep.subr.bf16.mxu0 0
    %224 = vmatpush1.bf16.msra.mxu0 0
    %225 = vmatprep.subr.bf16.mxu0 0
    %226 = vmatpush1.bf16.msra.mxu0 0
    %227 = vmatprep.mubr.bf16.mxu0 0
    %228 = vmatmul.mubr.bf16.gmra.mrb[0].mxu0 %v150
    %v229 = vpop.f32.mrb[0].mxu0
    %v230 = vadd.f32 %v112, %v229
    %v231 = vpop.f32.mrb[0].mxu0
    %v232 = vpop.f32.mrb[0].mxu0
    %v233 = vadd.f32 %v112, %v232
    %v234 = vpop.f32.mrb[0].mxu0
    %235 = vdwg.mxu0
    %v236 = vpack.c.bf16 %v187, %v187
    %v237 = vpack.c.bf16 %v191, %v191
    %v238 = vpack.c.bf16 %v189, %v189
    %v239 = vpack.c.bf16 %v193, %v193
    %240 = vmatprep.subr.bf16.mxu0 0
    %241 = vmatpush1.bf16.xpose.msra.mxu0 %v238
    %242 = vmatprep.subr.bf16.mxu0 0
    %243 = vmatpush1.bf16.xpose.msra.mxu0 0
    %244 = vmatprep.subr.bf16.mxu0 0
    %245 = vmatpush1.bf16.xpose.msra.mxu0 0
    %246 = vmatprep.subr.bf16.mxu0 0
    %247 = vmatpush1.bf16.xpose.msra.mxu0 0
    %248 = vmatprep.subr.bf16.mxu0 0
    %249 = vmatpush1.bf16.xpose.msra.mxu0 0
    %250 = vmatprep.subr.bf16.mxu0 0
    %251 = vmatpush1.bf16.xpose.msra.mxu0 0
    %252 = vmatprep.subr.bf16.mxu0 0
    %253 = vmatpush1.bf16.xpose.msra.mxu0 0
    %254 = vmatprep.subr.bf16.mxu0 0
    %255 = vmatpush1.bf16.xpose.msra.mxu0 0
    %256 = vmatprep.subr.bf16.mxu0 0
    %257 = vmatpush1.bf16.xpose.msra.mxu0 0
    %258 = vmatprep.subr.bf16.mxu0 0
    %259 = vmatpush1.bf16.xpose.msra.mxu0 0
    %260 = vmatprep.subr.bf16.mxu0 0
    %261 = vmatpush1.bf16.xpose.msra.mxu0 0
    %262 = vmatprep.subr.bf16.mxu0 0
    %263 = vmatpush1.bf16.xpose.msra.mxu0 0
    %264 = vmatprep.subr.bf16.mxu0 0
    %265 = vmatpush1.bf16.xpose.msra.mxu0 0
    %266 = vmatprep.subr.bf16.mxu0 0
    %267 = vmatpush1.bf16.xpose.msra.mxu0 0
    %268 = vmatprep.subr.bf16.mxu0 0
    %269 = vmatpush1.bf16.xpose.msra.mxu0 0
    %270 = vmatprep.subr.bf16.mxu0 0
    %271 = vmatpush1.bf16.xpose.msra.mxu0 0
    %272 = vmatprep.mubr.bf16.mxu0 0
    %273 = vmatmul.mubr.bf16.gmra.mrb[0].mxu0 %v236
    %v274 = vpop.f32.mrb[0].mxu0
    %v275 = vadd.f32 0.0, %v274
    %v276 = vpop.f32.mrb[0].mxu0
    %v277 = vpop.f32.mrb[0].mxu0
    %v278 = vpop.f32.mrb[0].mxu0
    %279 = vdwg.mxu0
    %280 = vmatprep.subr.bf16.mxu0 0
    %281 = vmatpush1.bf16.xpose.msra.mxu0 %v239
    %282 = vmatprep.subr.bf16.mxu0 0
    %283 = vmatpush1.bf16.xpose.msra.mxu0 0
    %284 = vmatprep.subr.bf16.mxu0 0
    %285 = vmatpush1.bf16.xpose.msra.mxu0 0
    %286 = vmatprep.subr.bf16.mxu0 0
    %287 = vmatpush1.bf16.xpose.msra.mxu0 0
    %288 = vmatprep.subr.bf16.mxu0 0
    %289 = vmatpush1.bf16.xpose.msra.mxu0 0
    %290 = vmatprep.subr.bf16.mxu0 0
    %291 = vmatpush1.bf16.xpose.msra.mxu0 0
    %292 = vmatprep.subr.bf16.mxu0 0
    %293 = vmatpush1.bf16.xpose.msra.mxu0 0
    %294 = vmatprep.subr.bf16.mxu0 0
    %295 = vmatpush1.bf16.xpose.msra.mxu0 0
    %296 = vmatprep.subr.bf16.mxu0 0
    %297 = vmatpush1.bf16.xpose.msra.mxu0 0
    %298 = vmatprep.subr.bf16.mxu0 0
    %299 = vmatpush1.bf16.xpose.msra.mxu0 0
    %300 = vmatprep.subr.bf16.mxu0 0
    %301 = vmatpush1.bf16.xpose.msra.mxu0 0
    %302 = vmatprep.subr.bf16.mxu0 0
    %303 = vmatpush1.bf16.xpose.msra.mxu0 0
    %304 = vmatprep.subr.bf16.mxu0 0
    %305 = vmatpush1.bf16.xpose.msra.mxu0 0
    %306 = vmatprep.subr.bf16.mxu0 0
    %307 = vmatpush1.bf16.xpose.msra.mxu0 0
    %308 = vmatprep.subr.bf16.mxu0 0
    %309 = vmatpush1.bf16.xpose.msra.mxu0 0
    %310 = vmatprep.subr.bf16.mxu0 0
    %311 = vmatpush1.bf16.xpose.msra.mxu0 0
    %312 = vmatprep.mubr.bf16.mxu0 0
    %313 = vmatmul.mubr.bf16.gmra.mrb[0].mxu0 %v237
    %v314 = vpop.f32.mrb[0].mxu0
    %v315 = vadd.f32 0.0, %v314
    %v316 = vpop.f32.mrb[0].mxu0
    %v317 = vpop.f32.mrb[0].mxu0
    %v318 = vpop.f32.mrb[0].mxu0
    %319 = vdwg.mxu0
    %vm320 = vcmask 64512
    %v321 = vsel %vm320, %v275, -inf
    %322 = vmax.xlane.f32.xlu0 %v321
    %v323 = vpop.xlane.xlu0 %322
    %v324 = vsel %vm320, %v315, -inf
    %325 = vmax.xlane.f32.xlu0 %v324
    %v326 = vpop.xlane.xlu0 %325
    %v327 = vsub.f32 %v275, %v323
    %v328 = vsub.f32 %v315, %v326
    %v329 = vmul.f32 %v327, 1.442695
    %v330 = vpow.pop %v329
    %v331 = vmul.f32 %v328, 1.442695
    %v332 = vpow.pop %v331
    %v333 = vsel %vm320, %v330, 0.0
    %334 = vadd.xlane.f32.xlu0 %v333
    %v335 = vpop.xlane.xlu0 %334
    %v336 = vsel %vm320, %v332, 0.0
    %337 = vadd.xlane.f32.xlu0 %v336
    %v338 = vpop.xlane.xlu0 %337
    %v339 = vrcp.pop %v335
    %v340 = vmul.f32 %v330, %v339
    %v341 = vrcp.pop %v338
    %v342 = vmul.f32 %v332, %v341
    %v343 = vpack.c.bf16 %v340, %v340
    %v344 = vpack.c.bf16 %v342, %v342
    %v345 = vpack.c.bf16 %v230, %v230
    %v346 = vpack.c.bf16 %v233, %v233
    %v348 = vsel %vm320, %v343, 0
    %vm350 = vcmask 1043456
    %v352 = vsel %vm350, %v345, 0
    %354 = vmatprep.subr.bf16.mxu0 0
    %355 = vmatpush1.bf16.msra.mxu0 %v352
    %356 = vmatprep.subr.bf16.mxu0 0
    %357 = vmatpush1.bf16.msra.mxu0 0
    %358 = vmatprep.subr.bf16.mxu0 0
    %359 = vmatpush1.bf16.msra.mxu0 0
    %360 = vmatprep.subr.bf16.mxu0 0
    %361 = vmatpush1.bf16.msra.mxu0 0
    %362 = vmatprep.subr.bf16.mxu0 0
    %363 = vmatpush1.bf16.msra.mxu0 0
    %364 = vmatprep.subr.bf16.mxu0 0
    %365 = vmatpush1.bf16.msra.mxu0 0
    %366 = vmatprep.subr.bf16.mxu0 0
    %367 = vmatpush1.bf16.msra.mxu0 0
    %368 = vmatprep.subr.bf16.mxu0 0
    %369 = vmatpush1.bf16.msra.mxu0 0
    %370 = vmatprep.subr.bf16.mxu0 0
    %371 = vmatpush1.bf16.msra.mxu0 0
    %372 = vmatprep.subr.bf16.mxu0 0
    %373 = vmatpush1.bf16.msra.mxu0 0
    %374 = vmatprep.subr.bf16.mxu0 0
    %375 = vmatpush1.bf16.msra.mxu0 0
    %376 = vmatprep.subr.bf16.mxu0 0
    %377 = vmatpush1.bf16.msra.mxu0 0
    %378 = vmatprep.subr.bf16.mxu0 0
    %379 = vmatpush1.bf16.msra.mxu0 0
    %380 = vmatprep.subr.bf16.mxu0 0
    %381 = vmatpush1.bf16.msra.mxu0 0
    %382 = vmatprep.subr.bf16.mxu0 0
    %383 = vmatpush1.bf16.msra.mxu0 0
    %384 = vmatprep.subr.bf16.mxu0 0
    %385 = vmatpush1.bf16.msra.mxu0 0
    %386 = vmatprep.mubr.bf16.mxu0 0
    %387 = vmatmul.mubr.bf16.gmra.mrb[0].mxu0 %v348
    %v388 = vpop.f32.mrb[0].mxu0
    %v389 = vadd.f32 0.0, %v388
    %v390 = vpop.f32.mrb[0].mxu0
    %v391 = vpop.f32.mrb[0].mxu0
    %v392 = vpop.f32.mrb[0].mxu0
    %393 = vdwg.mxu0
    %v395 = vsel %vm320, %v344, 0
    %v398 = vsel %vm350, %v346, 0
    %400 = vmatprep.subr.bf16.mxu0 0
    %401 = vmatpush1.bf16.msra.mxu0 %v398
    %402 = vmatprep.subr.bf16.mxu0 0
    %403 = vmatpush1.bf16.msra.mxu0 0
    %404 = vmatprep.subr.bf16.mxu0 0
    %405 = vmatpush1.bf16.msra.mxu0 0
    %406 = vmatprep.subr.bf16.mxu0 0
    %407 = vmatpush1.bf16.msra.mxu0 0
    %408 = vmatprep.subr.bf16.mxu0 0
    %409 = vmatpush1.bf16.msra.mxu0 0
    %410 = vmatprep.subr.bf16.mxu0 0
    %411 = vmatpush1.bf16.msra.mxu0 0
    %412 = vmatprep.subr.bf16.mxu0 0
    %413 = vmatpush1.bf16.msra.mxu0 0
    %414 = vmatprep.subr.bf16.mxu0 0
    %415 = vmatpush1.bf16.msra.mxu0 0
    %416 = vmatprep.subr.bf16.mxu0 0
    %417 = vmatpush1.bf16.msra.mxu0 0
    %418 = vmatprep.subr.bf16.mxu0 0
    %419 = vmatpush1.bf16.msra.mxu0 0
    %420 = vmatprep.subr.bf16.mxu0 0
    %421 = vmatpush1.bf16.msra.mxu0 0
    %422 = vmatprep.subr.bf16.mxu0 0
    %423 = vmatpush1.bf16.msra.mxu0 0
    %424 = vmatprep.subr.bf16.mxu0 0
    %425 = vmatpush1.bf16.msra.mxu0 0
    %426 = vmatprep.subr.bf16.mxu0 0
    %427 = vmatpush1.bf16.msra.mxu0 0
    %428 = vmatprep.subr.bf16.mxu0 0
    %429 = vmatpush1.bf16.msra.mxu0 0
    %430 = vmatprep.subr.bf16.mxu0 0
    %431 = vmatpush1.bf16.msra.mxu0 0
    %432 = vmatprep.mubr.bf16.mxu0 0
    %433 = vmatmul.mubr.bf16.gmra.mrb[0].mxu0 %v395
    %v434 = vpop.f32.mrb[0].mxu0
    %v435 = vadd.f32 0.0, %v434
    %v436 = vpop.f32.mrb[0].mxu0
    %v437 = vpop.f32.mrb[0].mxu0
    %v438 = vpop.f32.mrb[0].mxu0
    %439 = vdwg.mxu0
    %v440 = vpack.c.bf16 %v435, %v389
    %v441 = vld [vmem:[%s4] sm:$0xf]
    %v442 = vld [vmem:[%s4 + $0x4] sm:$0xf]
    %v443 = vld [vmem:[%s4 + $0x8] sm:$0xf]
    %v444 = vld [vmem:[%s4 + $0xc] sm:$0xf]
    %v445 = vld [vmem:[%s4 + $0x10] sm:$0xf]
    %v446 = vld [vmem:[%s4 + $0x14] sm:$0xf]
    %v447 = vld [vmem:[%s4 + $0x18] sm:$0xf]
    %v448 = vld [vmem:[%s4 + $0x1c] sm:$0xf]
    %v449 = vld [vmem:[%s4 + $0x20] sm:$0xf]
    %v450 = vld [vmem:[%s4 + $0x24] sm:$0xf]
    %v451 = vld [vmem:[%s4 + $0x28] sm:$0xf]
    %v452 = vld [vmem:[%s4 + $0x2c] sm:$0xf]
    %v453 = vld [vmem:[%s4 + $0x30] sm:$0xf]
    %v454 = vld [vmem:[%s4 + $0x34] sm:$0xf]
    %v455 = vld [vmem:[%s4 + $0x38] sm:$0xf]
    %v456 = vld [vmem:[%s4 + $0x3c] sm:$0xf]
    %v457 = vld [vmem:[%s5] sm:$0x1]
    %v459 = vlaneseq
    %v460 = vshrl.u32 %v459, 7
    %v461 = vsub.s32 0, %v460
    %v462 = vrot.slane %v457, %v461
    %v480 = vunpack.c.l.b16 %v441
    %v481 = vunpack.c.l.b16 %v442
    %v482 = vunpack.c.l.b16 %v443
    %v483 = vunpack.c.l.b16 %v444
    %v484 = vunpack.c.l.b16 %v445
    %v485 = vunpack.c.l.b16 %v446
    %v486 = vunpack.c.l.b16 %v447
    %v487 = vunpack.c.l.b16 %v448
    %v488 = vunpack.c.l.b16 %v449
    %v489 = vunpack.c.l.b16 %v450
    %v490 = vunpack.c.l.b16 %v451
    %v491 = vunpack.c.l.b16 %v452
    %v492 = vunpack.c.l.b16 %v453
    %v493 = vunpack.c.l.b16 %v454
    %v494 = vunpack.c.l.b16 %v455
    %v495 = vunpack.c.l.b16 %v456
    %v496 = vpack.c.b16 %v481, %v480
    %v497 = vpack.c.b16 %v483, %v482
    %v498 = vpack.c.b16 %v485, %v484
    %v499 = vpack.c.b16 %v487, %v486
    %v500 = vpack.c.b16 %v489, %v488
    %v501 = vpack.c.b16 %v491, %v490
    %v502 = vpack.c.b16 %v493, %v492
    %v503 = vpack.c.b16 %v495, %v494
    %512 = vmatprep.subr.bf16.mxu0 0
    %513 = vmatpush1.bf16.msra.mxu0 %v496
    %514 = vmatprep.subr.bf16.mxu0 0
    %515 = vmatpush1.bf16.msra.mxu0 %v497
    %516 = vmatprep.subr.bf16.mxu0 0
    %517 = vmatpush1.bf16.msra.mxu0 %v498
    %518 = vmatprep.subr.bf16.mxu0 0
    %519 = vmatpush1.bf16.msra.mxu0 %v499
    %520 = vmatprep.subr.bf16.mxu0 0
    %521 = vmatpush1.bf16.msra.mxu0 %v500
    %522 = vmatprep.subr.bf16.mxu0 0
    %523 = vmatpush1.bf16.msra.mxu0 %v501
    %524 = vmatprep.subr.bf16.mxu0 0
    %525 = vmatpush1.bf16.msra.mxu0 %v502
    %526 = vmatprep.subr.bf16.mxu0 0
    %527 = vmatpush1.bf16.msra.mxu0 %v503
    %528 = vmatprep.subr.bf16.mxu0 0
    %529 = vmatpush1.bf16.msra.mxu0 0
    %530 = vmatprep.subr.bf16.mxu0 0
    %531 = vmatpush1.bf16.msra.mxu0 0
    %532 = vmatprep.subr.bf16.mxu0 0
    %533 = vmatpush1.bf16.msra.mxu0 0
    %534 = vmatprep.subr.bf16.mxu0 0
    %535 = vmatpush1.bf16.msra.mxu0 0
    %536 = vmatprep.subr.bf16.mxu0 0
    %537 = vmatpush1.bf16.msra.mxu0 0
    %538 = vmatprep.subr.bf16.mxu0 0
    %539 = vmatpush1.bf16.msra.mxu0 0
    %540 = vmatprep.subr.bf16.mxu0 0
    %541 = vmatpush1.bf16.msra.mxu0 0
    %542 = vmatprep.subr.bf16.mxu0 0
    %543 = vmatpush1.bf16.msra.mxu0 0
    %544 = vmatprep.mubr.bf16.mxu0 0
    %545 = vmatmul.mubr.bf16.gmra.mrb[0].mxu0 %v440
    %v546 = vpop.f32.mrb[0].mxu0
    %v547 = vadd.f32 %v462, %v546
    %v548 = vpop.f32.mrb[0].mxu0
    %v549 = vpop.f32.mrb[0].mxu0
    %v550 = vadd.f32 %v462, %v549
    %v551 = vpop.f32.mrb[0].mxu0
    %552 = vdwg.mxu0
    %v553 = vadd.f32 %v88, %v547
    %v554 = vadd.f32 %v89, %v550
    %v555 = vld [vmem:[%s6] sm:$0x1]
    %v556 = vld [vmem:[%s7] sm:$0x1]
    %v557 = vsel %vm148, %v553, 0.0
    %558 = vadd.xlane.f32.xlu0 %v557
    %v559 = vpop.xlane.xlu0 %558
    %v560 = vsel %vm148, %v554, 0.0
    %561 = vadd.xlane.f32.xlu0 %v560
    %v562 = vpop.xlane.xlu0 %561
    %v563 = vrcp.pop 32.0
    %v564 = vmul.f32 %v559, %v563
    %v565 = vmul.f32 %v562, %v563
    %v566 = vsub.f32 %v553, %v564
    %v567 = vsub.f32 %v554, %v565
    %v568 = vmul.f32 %v566, %v566
    %v569 = vmul.f32 %v567, %v567
    %v570 = vsel %vm148, %v568, 0.0
    %571 = vadd.xlane.f32.xlu0 %v570
    %v572 = vpop.xlane.xlu0 %571
    %v573 = vsel %vm148, %v569, 0.0
    %574 = vadd.xlane.f32.xlu0 %v573
    %v575 = vpop.xlane.xlu0 %574
    %v576 = vmul.f32 %v572, %v563
    %v577 = vmul.f32 %v575, %v563
    %v578 = vadd.f32 %v576, 1e-05
    %v579 = vadd.f32 %v577, 1e-05
    %v580 = vrsqrt.pop %v578
    %v581 = vrsqrt.pop %v579
    %v582 = vmul.f32 %v566, %v580
    %v583 = vmul.f32 %v567, %v581
    %v585 = vlaneseq
    %v586 = vshrl.u32 %v585, 7
    %v587 = vsub.s32 0, %v586
    %v588 = vrot.slane %v555, %v587
    %v590 = vmul.f32 %v582, %v588
    %v591 = vmul.f32 %v583, %v588
    %v593 = vlaneseq
    %v594 = vshrl.u32 %v593, 7
    %v595 = vsub.s32 0, %v594
    %v596 = vrot.slane %v556, %v595
    %v598 = vadd.f32 %v590, %v596
    %v599 = vadd.f32 %v591, %v596
    %v600 = vpack.c.bf16 %v599, %v598
    %v601 = vld [vmem:[%s8] sm:$0xf]
    %v602 = vld [vmem:[%s8 + $0x4] sm:$0xf]
    %v603 = vld [vmem:[%s8 + $0x8] sm:$0xf]
    %v604 = vld [vmem:[%s8 + $0xc] sm:$0xf]
    %v605 = vld [vmem:[%s9] sm:$0x1]
    %v607 = vlaneseq
    %v608 = vshrl.u32 %v607, 7
    %v609 = vsub.s32 0, %v608
    %v610 = vrot.slane %v605, %v609
    %v616 = vunpack.c.l.b16 %v601
    %v617 = vunpack.c.l.b16 %v602
    %v618 = vunpack.c.l.b16 %v603
    %v619 = vunpack.c.l.b16 %v604
    %v620 = vpack.c.b16 %v617, %v616
    %v621 = vpack.c.b16 %v619, %v618
    %v625 = vsel %vm148, %v600, 0
    %627 = vmatprep.subr.bf16.mxu0 0
    %628 = vmatpush1.bf16.msra.mxu0 %v620
    %629 = vmatprep.subr.bf16.mxu0 0
    %630 = vmatpush1.bf16.msra.mxu0 %v621
    %631 = vmatprep.subr.bf16.mxu0 0
    %632 = vmatpush1.bf16.msra.mxu0 0
    %633 = vmatprep.subr.bf16.mxu0 0
    %634 = vmatpush1.bf16.msra.mxu0 0
    %635 = vmatprep.subr.bf16.mxu0 0
    %636 = vmatpush1.bf16.msra.mxu0 0
    %637 = vmatprep.subr.bf16.mxu0 0
    %638 = vmatpush1.bf16.msra.mxu0 0
    %639 = vmatprep.subr.bf16.mxu0 0
    %640 = vmatpush1.bf16.msra.mxu0 0
    %641 = vmatprep.subr.bf16.mxu0 0
    %642 = vmatpush1.bf16.msra.mxu0 0
    %643 = vmatprep.subr.bf16.mxu0 0
    %644 = vmatpush1.bf16.msra.mxu0 0
    %645 = vmatprep.subr.bf16.mxu0 0
    %646 = vmatpush1.bf16.msra.mxu0 0
    %647 = vmatprep.subr.bf16.mxu0 0
    %648 = vmatpush1.bf16.msra.mxu0 0
    %649 = vmatprep.subr.bf16.mxu0 0
    %650 = vmatpush1.bf16.msra.mxu0 0
    %651 = vmatprep.subr.bf16.mxu0 0
    %652 = vmatpush1.bf16.msra.mxu0 0
    %653 = vmatprep.subr.bf16.mxu0 0
    %654 = vmatpush1.bf16.msra.mxu0 0
    %655 = vmatprep.subr.bf16.mxu0 0
    %656 = vmatpush1.bf16.msra.mxu0 0
    %657 = vmatprep.subr.bf16.mxu0 0
    %658 = vmatpush1.bf16.msra.mxu0 0
    %659 = vmatprep.mubr.bf16.mxu0 0
    %660 = vmatmul.mubr.bf16.gmra.mrb[0].mxu0 %v625
    %v661 = vpop.f32.mrb[0].mxu0
    %v662 = vadd.f32 %v610, %v661
    %v663 = vpop.f32.mrb[0].mxu0
    %v664 = vpop.f32.mrb[0].mxu0
    %v665 = vadd.f32 %v610, %v664
    %v666 = vpop.f32.mrb[0].mxu0
    %667 = vdwg.mxu0
    %v668 = vmax.f32 %v662, 0.0
    %v669 = vmax.f32 %v665, 0.0
    %v670 = vpack.c.bf16 %v669, %v668
    %v671 = vld [vmem:[%s10] sm:$0xf]
    %v672 = vld [vmem:[%s10 + $0x4] sm:$0xf]
    %v673 = vld [vmem:[%s10 + $0x8] sm:$0xf]
    %v674 = vld [vmem:[%s10 + $0xc] sm:$0xf]
    %v675 = vld [vmem:[%s10 + $0x10] sm:$0xf]
    %v676 = vld [vmem:[%s10 + $0x14] sm:$0xf]
    %v677 = vld [vmem:[%s10 + $0x18] sm:$0xf]
    %v678 = vld [vmem:[%s10 + $0x1c] sm:$0xf]
    %v679 = vld [vmem:[%s10 + $0x20] sm:$0xf]
    %v680 = vld [vmem:[%s10 + $0x24] sm:$0xf]
    %v681 = vld [vmem:[%s10 + $0x28] sm:$0xf]
    %v682 = vld [vmem:[%s10 + $0x2c] sm:$0xf]
    %v683 = vld [vmem:[%s10 + $0x30] sm:$0xf]
    %v684 = vld [vmem:[%s10 + $0x34] sm:$0xf]
    %v685 = vld [vmem:[%s10 + $0x38] sm:$0xf]
    %v686 = vld [vmem:[%s10 + $0x3c] sm:$0xf]
    %v687 = vld [vmem:[%s11] sm:$0x1]
    %v689 = vlaneseq
    %v690 = vshrl.u32 %v689, 7
    %v691 = vsub.s32 0, %v690
    %v692 = vrot.slane %v687, %v691
    %v710 = vunpack.c.l.b16 %v671
    %v711 = vunpack.c.l.b16 %v672
    %v712 = vunpack.c.l.b16 %v673
    %v713 = vunpack.c.l.b16 %v674
    %v714 = vunpack.c.l.b16 %v675
    %v715 = vunpack.c.l.b16 %v676
    %v716 = vunpack.c.l.b16 %v677
    %v717 = vunpack.c.l.b16 %v678
    %v718 = vunpack.c.l.b16 %v679
    %v719 = vunpack.c.l.b16 %v680
    %v720 = vunpack.c.l.b16 %v681
    %v721 = vunpack.c.l.b16 %v682
    %v722 = vunpack.c.l.b16 %v683
    %v723 = vunpack.c.l.b16 %v684
    %v724 = vunpack.c.l.b16 %v685
    %v725 = vunpack.c.l.b16 %v686
    %v726 = vpack.c.b16 %v711, %v710
    %v727 = vpack.c.b16 %v713, %v712
    %v728 = vpack.c.b16 %v715, %v714
    %v729 = vpack.c.b16 %v717, %v716
    %v730 = vpack.c.b16 %v719, %v718
    %v731 = vpack.c.b16 %v721, %v720
    %v732 = vpack.c.b16 %v723, %v722
    %v733 = vpack.c.b16 %v725, %v724
    %742 = vmatprep.subr.bf16.mxu0 0
    %743 = vmatpush1.bf16.msra.mxu0 %v726
    %744 = vmatprep.subr.bf16.mxu0 0
    %745 = vmatpush1.bf16.msra.mxu0 %v727
    %746 = vmatprep.subr.bf16.mxu0 0
    %747 = vmatpush1.bf16.msra.mxu0 %v728
    %748 = vmatprep.subr.bf16.mxu0 0
    %749 = vmatpush1.bf16.msra.mxu0 %v729
    %750 = vmatprep.subr.bf16.mxu0 0
    %751 = vmatpush1.bf16.msra.mxu0 %v730
    %752 = vmatprep.subr.bf16.mxu0 0
    %753 = vmatpush1.bf16.msra.mxu0 %v731
    %754 = vmatprep.subr.bf16.mxu0 0
    %755 = vmatpush1.bf16.msra.mxu0 %v732
    %756 = vmatprep.subr.bf16.mxu0 0
    %757 = vmatpush1.bf16.msra.mxu0 %v733
    %758 = vmatprep.subr.bf16.mxu0 0
    %759 = vmatpush1.bf16.msra.mxu0 0
    %760 = vmatprep.subr.bf16.mxu0 0
    %761 = vmatpush1.bf16.msra.mxu0 0
    %762 = vmatprep.subr.bf16.mxu0 0
    %763 = vmatpush1.bf16.msra.mxu0 0
    %764 = vmatprep.subr.bf16.mxu0 0
    %765 = vmatpush1.bf16.msra.mxu0 0
    %766 = vmatprep.subr.bf16.mxu0 0
    %767 = vmatpush1.bf16.msra.mxu0 0
    %768 = vmatprep.subr.bf16.mxu0 0
    %769 = vmatpush1.bf16.msra.mxu0 0
    %770 = vmatprep.subr.bf16.mxu0 0
    %771 = vmatpush1.bf16.msra.mxu0 0
    %772 = vmatprep.subr.bf16.mxu0 0
    %773 = vmatpush1.bf16.msra.mxu0 0
    %774 = vmatprep.mubr.bf16.mxu0 0
    %775 = vmatmul.mubr.bf16.gmra.mrb[0].mxu0 %v670
    %v776 = vpop.f32.mrb[0].mxu0
    %v777 = vadd.f32 %v692, %v776
    %v778 = vpop.f32.mrb[0].mxu0
    %v779 = vpop.f32.mrb[0].mxu0
    %v780 = vadd.f32 %v692, %v779
    %v781 = vpop.f32.mrb[0].mxu0
    %782 = vdwg.mxu0
    %v783 = vadd.f32 %v598, %v777
    %v784 = vadd.f32 %v599, %v780
    %v785 = vld [vmem:[%s12] sm:$0x1]
    %v786 = vld [vmem:[%s13] sm:$0x1]
    %v787 = vsel %vm148, %v783, 0.0
    %788 = vadd.xlane.f32.xlu0 %v787
    %v789 = vpop.xlane.xlu0 %788
    %v790 = vsel %vm148, %v784, 0.0
    %791 = vadd.xlane.f32.xlu0 %v790
    %v792 = vpop.xlane.xlu0 %791
    %v793 = vmul.f32 %v789, %v563
    %v794 = vmul.f32 %v792, %v563
    %v795 = vsub.f32 %v783, %v793
    %v796 = vsub.f32 %v784, %v794
    %v797 = vmul.f32 %v795, %v795
    %v798 = vmul.f32 %v796, %v796
    %v799 = vsel %vm148, %v797, 0.0
    %800 = vadd.xlane.f32.xlu0 %v799
    %v801 = vpop.xlane.xlu0 %800
    %v802 = vsel %vm148, %v798, 0.0
    %803 = vadd.xlane.f32.xlu0 %v802
    %v804 = vpop.xlane.xlu0 %803
    %v805 = vmul.f32 %v801, %v563
    %v806 = vmul.f32 %v804, %v563
    %v807 = vadd.f32 %v805, 1e-05
    %v808 = vadd.f32 %v806, 1e-05
    %v809 = vrsqrt.pop %v807
    %v810 = vrsqrt.pop %v808
    %v811 = vmul.f32 %v795, %v809
    %v812 = vmul.f32 %v796, %v810
    %v814 = vlaneseq
    %v815 = vshrl.u32 %v814, 7
    %v816 = vsub.s32 0, %v815
    %v817 = vrot.slane %v785, %v816
    %v819 = vmul.f32 %v811, %v817
    %v820 = vmul.f32 %v812, %v817
    %v822 = vlaneseq
    %v823 = vshrl.u32 %v822, 7
    %v824 = vsub.s32 0, %v823
    %v825 = vrot.slane %v786, %v824
    %v827 = vadd.f32 %v819, %v825
    %v828 = vadd.f32 %v820, %v825
    %v829 = vsel %vm148, %v827, 0.0
    %v830 = vrot.slane %v829, 4
    %v831 = vadd.f32 %v829, %v830
    %v832 = vrot.slane %v831, 2
    %v833 = vadd.f32 %v831, %v832
    %v834 = vrot.slane %v833, 1
    %v835 = vadd.f32 %v833, %v834
    %v836 = vsel %vm148, %v828, 0.0
    %v837 = vrot.slane %v836, 4
    %v838 = vadd.f32 %v836, %v837
    %v839 = vrot.slane %v838, 2
    %v840 = vadd.f32 %v838, %v839
    %v841 = vrot.slane %v840, 1
    %v842 = vadd.f32 %v840, %v841
    %v843 = vrcp.pop 8.0
    %v844 = vmul.f32 %v835, %v843
    %v845 = vmul.f32 %v842, %v843
    %v846 = vpack.c.bf16 %v844, %v844
    %v847 = vpack.c.bf16 %v845, %v845
    %v848 = vld [vmem:[%s14] sm:$0xf]
    %v849 = vld [vmem:[%s14 + $0x4] sm:$0xf]
    %v850 = vld [vmem:[%s14 + $0x8] sm:$0xf]
    %v851 = vld [vmem:[%s14 + $0xc] sm:$0xf]
    %v852 = vld [vmem:[%s15] sm:$0x1]
    %v854 = vlaneseq
    %v855 = vshrl.u32 %v854, 7
    %v856 = vsub.s32 0, %v855
    %v857 = vrot.slane %v852, %v856
    %v861 = vunpack.c.l.b16 %v846
    %v862 = vunpack.c.l.b16 %v847
    %vm863 = vcmask 1041409
    %v864 = vsel %vm863, %v862, %v861
    %v865 = vpack.c.b16 %v864, %v864
    %v870 = vunpack.c.l.b16 %v848
    %v871 = vunpack.c.l.b16 %v849
    %v872 = vunpack.c.l.b16 %v850
    %v873 = vunpack.c.l.b16 %v851
    %v874 = vpack.c.b16 %v871, %v870
    %v875 = vpack.c.b16 %v873, %v872
    %v879 = vsel %vm148, %v865, 0
    %881 = vmatprep.subr.bf16.mxu0 0
    %882 = vmatpush1.bf16.msra.mxu0 %v874
    %883 = vmatprep.subr.bf16.mxu0 0
    %884 = vmatpush1.bf16.msra.mxu0 %v875
    %885 = vmatprep.subr.bf16.mxu0 0
    %886 = vmatpush1.bf16.msra.mxu0 0
    %887 = vmatprep.subr.bf16.mxu0 0
    %888 = vmatpush1.bf16.msra.mxu0 0
    %889 = vmatprep.subr.bf16.mxu0 0
    %890 = vmatpush1.bf16.msra.mxu0 0
    %891 = vmatprep.subr.bf16.mxu0 0
    %892 = vmatpush1.bf16.msra.mxu0 0
    %893 = vmatprep.subr.bf16.mxu0 0
    %894 = vmatpush1.bf16.msra.mxu0 0
    %895 = vmatprep.subr.bf16.mxu0 0
    %896 = vmatpush1.bf16.msra.mxu0 0
    %897 = vmatprep.subr.bf16.mxu0 0
    %898 = vmatpush1.bf16.msra.mxu0 0
    %899 = vmatprep.subr.bf16.mxu0 0
    %900 = vmatpush1.bf16.msra.mxu0 0
    %901 = vmatprep.subr.bf16.mxu0 0
    %902 = vmatpush1.bf16.msra.mxu0 0
    %903 = vmatprep.subr.bf16.mxu0 0
    %904 = vmatpush1.bf16.msra.mxu0 0
    %905 = vmatprep.subr.bf16.mxu0 0
    %906 = vmatpush1.bf16.msra.mxu0 0
    %907 = vmatprep.subr.bf16.mxu0 0
    %908 = vmatpush1.bf16.msra.mxu0 0
    %909 = vmatprep.subr.bf16.mxu0 0
    %910 = vmatpush1.bf16.msra.mxu0 0
    %911 = vmatprep.subr.bf16.mxu0 0
    %912 = vmatpush1.bf16.msra.mxu0 0
    %913 = vmatprep.mubr.bf16.mxu0 0
    %914 = vmatmul.mubr.bf16.gmra.mrb[0].mxu0 %v879
    %v915 = vpop.f32.mrb[0].mxu0
    %v916 = vadd.f32 %v857, %v915
    %v917 = vpop.f32.mrb[0].mxu0
    %v918 = vpop.f32.mrb[0].mxu0
    %v919 = vpop.f32.mrb[0].mxu0
    %920 = vdwg.mxu0
    %v921 = vmax.f32 %v916, 0.0
    %v922 = vpack.c.bf16 %v921, %v921
    %v923 = vld [vmem:[%s16] sm:$0xf]
    %v924 = vld [vmem:[%s16 + $0x4] sm:$0xf]
    %v925 = vld [vmem:[%s16 + $0x8] sm:$0xf]
    %v926 = vld [vmem:[%s16 + $0xc] sm:$0xf]
    %v927 = vld [vmem:[%s16 + $0x10] sm:$0xf]
    %v928 = vld [vmem:[%s16 + $0x14] sm:$0xf]
    %v929 = vld [vmem:[%s16 + $0x18] sm:$0xf]
    %v930 = vld [vmem:[%s16 + $0x1c] sm:$0xf]
    %v931 = vld [vmem:[%s16 + $0x20] sm:$0xf]
    %v932 = vld [vmem:[%s16 + $0x24] sm:$0xf]
    %v933 = vld [vmem:[%s16 + $0x28] sm:$0xf]
    %v934 = vld [vmem:[%s16 + $0x2c] sm:$0xf]
    %v935 = vld [vmem:[%s16 + $0x30] sm:$0xf]
    %v936 = vld [vmem:[%s16 + $0x34] sm:$0xf]
    %v937 = vld [vmem:[%s16 + $0x38] sm:$0xf]
    %v938 = vld [vmem:[%s16 + $0x3c] sm:$0xf]
    %v939 = vld [vmem:[%s17] sm:$0x1]
    %v941 = vlaneseq
    %v942 = vshrl.u32 %v941, 7
    %v943 = vsub.s32 0, %v942
    %v944 = vrot.slane %v939, %v943
    %v962 = vunpack.c.l.b16 %v923
    %v963 = vunpack.c.l.b16 %v924
    %v964 = vunpack.c.l.b16 %v925
    %v965 = vunpack.c.l.b16 %v926
    %v966 = vunpack.c.l.b16 %v927
    %v967 = vunpack.c.l.b16 %v928
    %v968 = vunpack.c.l.b16 %v929
    %v969 = vunpack.c.l.b16 %v930
    %v970 = vunpack.c.l.b16 %v931
    %v971 = vunpack.c.l.b16 %v932
    %v972 = vunpack.c.l.b16 %v933
    %v973 = vunpack.c.l.b16 %v934
    %v974 = vunpack.c.l.b16 %v935
    %v975 = vunpack.c.l.b16 %v936
    %v976 = vunpack.c.l.b16 %v937
    %v977 = vunpack.c.l.b16 %v938
    %v978 = vpack.c.b16 %v963, %v962
    %v979 = vpack.c.b16 %v965, %v964
    %v980 = vpack.c.b16 %v967, %v966
    %v981 = vpack.c.b16 %v969, %v968
    %v982 = vpack.c.b16 %v971, %v970
    %v983 = vpack.c.b16 %v973, %v972
    %v984 = vpack.c.b16 %v975, %v974
    %v985 = vpack.c.b16 %v977, %v976
    %994 = vmatprep.subr.bf16.mxu0 0
    %995 = vmatpush1.bf16.msra.mxu0 %v978
    %996 = vmatprep.subr.bf16.mxu0 0
    %997 = vmatpush1.bf16.msra.mxu0 %v979
    %998 = vmatprep.subr.bf16.mxu0 0
    %999 = vmatpush1.bf16.msra.mxu0 %v980
    %1000 = vmatprep.subr.bf16.mxu0 0
    %1001 = vmatpush1.bf16.msra.mxu0 %v981
    %1002 = vmatprep.subr.bf16.mxu0 0
    %1003 = vmatpush1.bf16.msra.mxu0 %v982
    %1004 = vmatprep.subr.bf16.mxu0 0
    %1005 = vmatpush1.bf16.msra.mxu0 %v983
    %1006 = vmatprep.subr.bf16.mxu0 0
    %1007 = vmatpush1.bf16.msra.mxu0 %v984
    %1008 = vmatprep.subr.bf16.mxu0 0
    %1009 = vmatpush1.bf16.msra.mxu0 %v985
    %1010 = vmatprep.subr.bf16.mxu0 0
    %1011 = vmatpush1.bf16.msra.mxu0 0
    %1012 = vmatprep.subr.bf16.mxu0 0
    %1013 = vmatpush1.bf16.msra.mxu0 0
    %1014 = vmatprep.subr.bf16.mxu0 0
    %1015 = vmatpush1.bf16.msra.mxu0 0
    %1016 = vmatprep.subr.bf16.mxu0 0
    %1017 = vmatpush1.bf16.msra.mxu0 0
    %1018 = vmatprep.subr.bf16.mxu0 0
    %1019 = vmatpush1.bf16.msra.mxu0 0
    %1020 = vmatprep.subr.bf16.mxu0 0
    %1021 = vmatpush1.bf16.msra.mxu0 0
    %1022 = vmatprep.subr.bf16.mxu0 0
    %1023 = vmatpush1.bf16.msra.mxu0 0
    %1024 = vmatprep.subr.bf16.mxu0 0
    %1025 = vmatpush1.bf16.msra.mxu0 0
    %1026 = vmatprep.mubr.bf16.mxu0 0
    %1027 = vmatmul.mubr.bf16.gmra.mrb[0].mxu0 %v922
    %v1028 = vpop.f32.mrb[0].mxu0
    %v1029 = vadd.f32 %v944, %v1028
    %v1030 = vpop.f32.mrb[0].mxu0
    %v1031 = vpop.f32.mrb[0].mxu0
    %v1032 = vpop.f32.mrb[0].mxu0
    %1033 = vdwg.mxu0
    %1034 = vst [vmem:[#allocation7] sm:$0x3] %v1029
    // Predicated region
    $region82: #{tpu_custom_call.1} parent=1 // pred_check
      _
    $region83: #{tpu_custom_call.1} parent=1 // pred_check_branch
      %1036 = sbr.rel (0) target = $region85
    $region84: #{tpu_custom_call.1} parent=1 // pred_region
      %s1038 = ssub.s32 32, 32
      %1039 = vsyncadd [#allocation4], %s1038
      %s1041 = sshll.u32 [#allocation7], 4
      %s1042 = int_to_ptr.vmem [resolvable:$true] %s1041
      %1044 = dma.vmem_to_hbm [thread:$0]  %s1042, 32, %s18, [#allocation4]
    $region85: #{tpu_custom_call.1} parent=1 // pred_fallthru
      _
    // Predicated region
    $region86: #{tpu_custom_call.1} parent=1 // pred_check
      _
    $region87: #{tpu_custom_call.1} parent=1 // pred_check_branch
      %1046 = sbr.rel (0) target = $region89
    $region88: #{tpu_custom_call.1} parent=1 // pred_region
      %1047 = dma.done [#allocation4], 32
    $region89: #{tpu_custom_call.1} parent=1 // pred_fallthru
      _
    %1048 = vsyncpa [#allocation3], 1
    %1049 = vsyncpa [#allocation6], 1
    %1050 = vsyncpa [#allocation4], 1

</llo_original>
